<compile_context>
chip_gen: v7x
topology: tpu7x:2x2x1
jax: 0.10.0
libtpu: 0.0.40
codegen_flags: <defaults>
</compile_context>

<pallas_src>
import jax
import jax.numpy as jnp
from jax.experimental import pallas as pl
from jax.experimental.pallas import tpu as pltpu


# card groups inside the 7-wide `cards` tensor: hole(2), board(3), turn(1), river(1)
_CARD_GROUPS = ((0, 2), (2, 5), (5, 6), (6, 7))


# ----------------------------- Pallas kernel --------------------------------

def _mlp_kernel(cards_ref, bets_ref,
                f0w, f1w, f2w, f3w, c1b,
                c2w, c2b, c3w, c3b,
                b1w, b1b, b2w, b2b,
                m1wx, m1wy, m1b,
                m2w, m2b, m3w, m3b,
                aw, ab,
                o_ref):
    f32 = jnp.float32
    bf16 = jnp.bfloat16
    relu = lambda v: jnp.maximum(v, 0.0)

    def mm(w_ref, x):
        # W @ x on the MXU: bf16 operands, f32 accumulation.
        return jnp.dot(w_ref[...], x.astype(bf16), preferred_element_type=f32)

    n_b = cards_ref.shape[1]
    card_iota = jax.lax.broadcasted_iota(jnp.int32, (52, n_b), 0)

    def group_onehot(lo, hi):
        # Summed one-hot of the cards in one group; invalid cards (-1) contribute 0.
        oh = jnp.zeros((52, n_b), dtype=f32)
        for j in range(lo, hi):
            cj = cards_ref[pl.ds(j, 1), :]                 # (1, B) int32
            hit = (card_iota == cj) & (cj >= 0)            # (52, B)
            oh = oh + hit.astype(f32)
        return oh.astype(bf16)                             # small ints -> exact in bf16

    # --- card tower (layer 1 fused with the embedding gather) ---
    x = c1b[...]
    for fw, (lo, hi) in zip((f0w, f1w, f2w, f3w), _CARD_GROUPS):
        x = x + mm(fw, group_onehot(lo, hi))
    x = relu(x)
    x = relu(mm(c2w, x) + c2b[...])
    x = relu(mm(c3w, x) + c3b[...])

    # --- bet tower (residual) ---
    y = relu(mm(b1w, bets_ref[...]) + b1b[...])
    y = relu(mm(b2w, y) + b2b[...] + y)

    # --- combined trunk; comb1 split avoids an in-kernel concat ---
    z = relu(mm(m1wx, x) + mm(m1wy, y) + m1b[...])
    z = relu(mm(m2w, z) + m2b[...] + z)
    z = relu(mm(m3w, z) + m3b[...] + z)

    # F.normalize(z, p=2) over features (axis 0 in this layout)
    norm = jnp.sqrt(jnp.sum(z * z, axis=0, keepdims=True))          # (1, B)
    z = z * pl.reciprocal(jnp.maximum(norm, 1e-12), approx=True)

    o_ref[...] = mm(aw, z) + ab[...]                                 # (n_actions, B)


# --------------------------- parameter creation ------------------------------

def _linear(key, fan_in, fan_out):
    kw, kb = jax.random.split(key)
    bound = 1.0 / jnp.sqrt(fan_in)
    w = jax.random.uniform(kw, (fan_in, fan_out), jnp.float32, -bound, bound)
    b = jax.random.uniform(kb, (1, fan_out), jnp.float32, -bound, bound)
    return w, b


def init_params(key, n_cardtypes, n_tablefeats, n_playerfeats, n_players,
                n_actions, dim):
    n_bet = n_tablefeats + n_playerfeats * n_players
    keys = jax.random.split(key, 10 + n_cardtypes)
    params = {}

    embs = []
    for i in range(n_cardtypes):
        k1, k2, k3 = jax.random.split(keys[i], 3)
        embs.append({
            "card": jax.random.normal(k1, (52, dim), jnp.float32),
            "rank": jax.random.normal(k2, (13, dim), jnp.float32),
            "suit": jax.random.normal(k3, (4, dim), jnp.float32),
        })
    params["card_embeddings"] = embs

    o = n_cardtypes
    params["card1_w"], params["card1_b"] = _linear(keys[o + 0], dim * n_cardtypes, dim)
    params["card2_w"], params["card2_b"] = _linear(keys[o + 1], dim, dim)
    params["card3_w"], params["card3_b"] = _linear(keys[o + 2], dim, dim)
    params["bet1_w"], params["bet1_b"] = _linear(keys[o + 3], n_bet, dim)
    params["bet2_w"], params["bet2_b"] = _linear(keys[o + 4], dim, dim)
    params["comb1_w"], params["comb1_b"] = _linear(keys[o + 5], 2 * dim, dim)
    params["comb2_w"], params["comb2_b"] = _linear(keys[o + 6], dim, dim)
    params["comb3_w"], params["comb3_b"] = _linear(keys[o + 7], dim, dim)
    params["action_w"], params["action_b"] = _linear(keys[o + 8], dim, n_actions)
    return params


# ------------------------------ forward pass ---------------------------------

def _round_up(x, m):
    return ((x + m - 1) // m) * m


def _combined_table(tbl):
    idx = jnp.arange(52)
    return tbl["card"] + tbl["rank"][idx // 4] + tbl["suit"][idx % 4]    # (52, dim)


def model_forward(cards, betfeats, params, *, block_n=1024):
    """cards: (N, 7) int32 in [-1, 51]; betfeats: (N, n_bet) float."""
    n = cards.shape[0]
    n_bet = betfeats.shape[1]
    dim = params["card2_w"].shape[0]
    n_actions = params["action_b"].shape[1]
    n_card_groups = len(params["card_embeddings"])
    assert n_card_groups == len(_CARD_GROUPS), "forward assumes 4 card groups"

    bf16 = jnp.bfloat16

    # ---- tiny one-time weight prep (f32 math, then bf16 for the MXU) ----
    fused_ws = []
    for g in range(n_card_groups):
        comb = _combined_table(params["card_embeddings"][g])            # (52, dim)
        w1_g = params["card1_w"][g * dim:(g + 1) * dim, :]              # (dim, dim)
        fused_ws.append((comb @ w1_g).T.astype(bf16))                   # (dim, 52)

    w_t = lambda name: params[name + "_w"].T.astype(bf16)               # (out, in)
    b_t = lambda name: params[name + "_b"].T.astype(jnp.float32)        # (out, 1)

    m1wx = params["comb1_w"][:dim, :].T.astype(bf16)
    m1wy = params["comb1_w"][dim:, :].T.astype(bf16)

    weights = fused_ws + [
        b_t("card1"),
        w_t("card2"), b_t("card2"),
        w_t("card3"), b_t("card3"),
        w_t("bet1"), b_t("bet1"),
        w_t("bet2"), b_t("bet2"),
        m1wx, m1wy, b_t("comb1"),
        w_t("comb2"), b_t("comb2"),
        w_t("comb3"), b_t("comb3"),
        w_t("action"), b_t("action"),
    ]

    # ---- activations: batch on the lane axis, padded to the batch tile ----
    bn = min(block_n, _round_up(max(n, 1), 128))      # tile (multiple of 128)
    padded = _round_up(n, bn)
    cards_t = jnp.pad(cards.astype(jnp.int32), ((0, padded - n), (0, 0)),
                      constant_values=-1).T                               # (7, P)
    bets_t = jnp.pad(betfeats.astype(jnp.float32),
                     ((0, padded - n), (0, 0))).T.astype(bf16)            # (n_bet, P)

    grid = (padded // bn,)
    data_spec = lambda rows: pl.BlockSpec((rows, bn), lambda i: (0, i))
    w_specs = [pl.BlockSpec(w.shape, lambda i: (0, 0)) for w in weights]

    flops_per_row = 2 * (n_card_groups * 52 * dim + n_bet * dim
                         + 7 * dim * dim + dim * n_actions)
    bytes_weights = sum(int(w.size) * w.dtype.itemsize for w in weights)
    cost = pl.CostEstimate(
        flops=int(flops_per_row * padded),
        transcendentals=int(2 * padded),
        bytes_accessed=int(cards_t.size * 4 + bets_t.size * 2
                           + padded * n_actions * 4 + bytes_weights),
    )

    out_t = pl.pallas_call(
        _mlp_kernel,
        out_shape=jax.ShapeDtypeStruct((n_actions, padded), jnp.float32),
        grid=grid,
        in_specs=[data_spec(7), data_spec(n_bet)] + w_specs,
        out_specs=pl.BlockSpec((n_actions, bn), lambda i: (0, i)),
        compiler_params=pltpu.CompilerParams(
            dimension_semantics=("parallel",),
            vmem_limit_bytes=32 * 1024 * 1024),
        cost_estimate=cost,
    )(cards_t, bets_t, *weights)

    return out_t.T[:n, :]                                                 # (N, n_actions)


# --------------------------- pure-JAX reference -------------------------------

def _card_embedding(group, tbl):
    valid = (group >= 0).astype(jnp.float32)
    idx = jnp.maximum(group, 0)
    e = tbl["card"][idx] + tbl["rank"][idx // 4] + tbl["suit"][idx % 4]
    e = e * valid[..., None]
    return e.sum(axis=1)


def model_forward_ref(cards, betfeats, params):
    groups = [cards[:, lo:hi] for lo, hi in _CARD_GROUPS]
    card_embs = jnp.concatenate(
        [_card_embedding(g, t) for g, t in zip(groups, params["card_embeddings"])],
        axis=1)
    relu = lambda v: jnp.maximum(v, 0.0)
    x = relu(card_embs @ params["card1_w"] + params["card1_b"])
    x = relu(x @ params["card2_w"] + params["card2_b"])
    x = relu(x @ params["card3_w"] + params["card3_b"])
    y = relu(betfeats.astype(jnp.float32) @ params["bet1_w"] + params["bet1_b"])
    y = relu(y @ params["bet2_w"] + params["bet2_b"] + y)
    z = jnp.concatenate([x, y], axis=1)
    z = relu(z @ params["comb1_w"] + params["comb1_b"])
    z = relu(z @ params["comb2_w"] + params["comb2_b"] + z)
    z = relu(z @ params["comb3_w"] + params["comb3_b"] + z)
    norm = jnp.sqrt(jnp.sum(z * z, axis=1, keepdims=True))
    z = z / jnp.maximum(norm, 1e-12)
    return z @ params["action_w"] + params["action_b"]


# ----------------------------------- main -------------------------------------

if __name__ == "__main__":
    N = 8
    dim = 32
    n_cardtypes = 4
    n_tablefeats = 8
    n_playerfeats = 4
    n_players = 2
    n_actions = 5
    n_bet = n_tablefeats + n_playerfeats * n_players

    key = jax.random.PRNGKey(0)
    kp, kc, kb, kc2, kb2 = jax.random.split(key, 5)

    params = init_params(kp, n_cardtypes, n_tablefeats, n_playerfeats,
                         n_players, n_actions, dim)

    # cards: (N, 7) int, values in [-1, 51]; -1 marks missing (turn/river)
    cards = jax.random.randint(kc, (N, 7), -1, 52, dtype=jnp.int32)
    betfeats = jax.random.normal(kb, (N, n_bet), jnp.float32)

    out = jax.block_until_ready(model_forward(cards, betfeats, params))
    ref = model_forward_ref(cards, betfeats, params)
    assert out.shape == (N, n_actions)
    # bf16 matmul operands (f32 accumulation) -> loosened tolerance vs f32 reference
    assert jnp.allclose(out, ref, atol=3e-2, rtol=3e-2), (
        f"mismatch vs JAX reference, max abs err {jnp.max(jnp.abs(out - ref))}")

    # exercise the batch grid: multiple tiles + tail padding
    N2 = 300
    cards2 = jax.random.randint(kc2, (N2, 7), -1, 52, dtype=jnp.int32)
    bets2 = jax.random.normal(kb2, (N2, n_bet), jnp.float32)
    out2 = jax.block_until_ready(model_forward(cards2, bets2, params, block_n=128))
    ref2 = model_forward_ref(cards2, bets2, params)
    assert out2.shape == (N2, n_actions)
    assert jnp.allclose(out2, ref2, atol=3e-2, rtol=3e-2), (
        f"grid-path mismatch, max abs err {jnp.max(jnp.abs(out2 - ref2))}")

    print("KERNEL_OK")
</pallas_src>

<mosaic_0001>
module attributes {stable_mosaic.version = 11 : i64} {
  func.func @_mlp_kernel(%arg0: i32, %arg1: memref<7x128xi32, #tpu.memory_space<vmem>>, %arg2: memref<16x128xbf16, #tpu.memory_space<vmem>>, %arg3: memref<32x52xbf16, #tpu.memory_space<vmem>>, %arg4: memref<32x52xbf16, #tpu.memory_space<vmem>>, %arg5: memref<32x52xbf16, #tpu.memory_space<vmem>>, %arg6: memref<32x52xbf16, #tpu.memory_space<vmem>>, %arg7: memref<32x1xf32, #tpu.memory_space<vmem>>, %arg8: memref<32x32xbf16, #tpu.memory_space<vmem>>, %arg9: memref<32x1xf32, #tpu.memory_space<vmem>>, %arg10: memref<32x32xbf16, #tpu.memory_space<vmem>>, %arg11: memref<32x1xf32, #tpu.memory_space<vmem>>, %arg12: memref<32x16xbf16, #tpu.memory_space<vmem>>, %arg13: memref<32x1xf32, #tpu.memory_space<vmem>>, %arg14: memref<32x32xbf16, #tpu.memory_space<vmem>>, %arg15: memref<32x1xf32, #tpu.memory_space<vmem>>, %arg16: memref<32x32xbf16, #tpu.memory_space<vmem>>, %arg17: memref<32x32xbf16, #tpu.memory_space<vmem>>, %arg18: memref<32x1xf32, #tpu.memory_space<vmem>>, %arg19: memref<32x32xbf16, #tpu.memory_space<vmem>>, %arg20: memref<32x1xf32, #tpu.memory_space<vmem>>, %arg21: memref<32x32xbf16, #tpu.memory_space<vmem>>, %arg22: memref<32x1xf32, #tpu.memory_space<vmem>>, %arg23: memref<5x32xbf16, #tpu.memory_space<vmem>>, %arg24: memref<5x1xf32, #tpu.memory_space<vmem>>, %arg25: memref<5x128xf32, #tpu.memory_space<vmem>>) attributes {dimension_semantics = [#tpu.dimension_semantics<parallel>], iteration_bounds = array<i64: 1>, scalar_prefetch = 0 : i64, scratch_operands = 0 : i64, tpu.core_type = #tpu.core_type<tc>, window_params = [{transform_indices = @transform_0, window_bounds = array<i64: 7, 128>}, {transform_indices = @transform_1, window_bounds = array<i64: 16, 128>}, {pipeline_mode = #tpu.pipeline_mode<synchronous>, transform_indices = @transform_2, window_bounds = array<i64: 32, 52>}, {pipeline_mode = #tpu.pipeline_mode<synchronous>, transform_indices = @transform_3, window_bounds = array<i64: 32, 52>}, {pipeline_mode = #tpu.pipeline_mode<synchronous>, transform_indices = @transform_4, window_bounds = array<i64: 32, 52>}, {pipeline_mode = #tpu.pipeline_mode<synchronous>, transform_indices = @transform_5, window_bounds = array<i64: 32, 52>}, {pipeline_mode = #tpu.pipeline_mode<synchronous>, transform_indices = @transform_6, window_bounds = array<i64: 32, 1>}, {pipeline_mode = #tpu.pipeline_mode<synchronous>, transform_indices = @transform_7, window_bounds = array<i64: 32, 32>}, {pipeline_mode = #tpu.pipeline_mode<synchronous>, transform_indices = @transform_8, window_bounds = array<i64: 32, 1>}, {pipeline_mode = #tpu.pipeline_mode<synchronous>, transform_indices = @transform_9, window_bounds = array<i64: 32, 32>}, {pipeline_mode = #tpu.pipeline_mode<synchronous>, transform_indices = @transform_10, window_bounds = array<i64: 32, 1>}, {pipeline_mode = #tpu.pipeline_mode<synchronous>, transform_indices = @transform_11, window_bounds = array<i64: 32, 16>}, {pipeline_mode = #tpu.pipeline_mode<synchronous>, transform_indices = @transform_12, window_bounds = array<i64: 32, 1>}, {pipeline_mode = #tpu.pipeline_mode<synchronous>, transform_indices = @transform_13, window_bounds = array<i64: 32, 32>}, {pipeline_mode = #tpu.pipeline_mode<synchronous>, transform_indices = @transform_14, window_bounds = array<i64: 32, 1>}, {pipeline_mode = #tpu.pipeline_mode<synchronous>, transform_indices = @transform_15, window_bounds = array<i64: 32, 32>}, {pipeline_mode = #tpu.pipeline_mode<synchronous>, transform_indices = @transform_16, window_bounds = array<i64: 32, 32>}, {pipeline_mode = #tpu.pipeline_mode<synchronous>, transform_indices = @transform_17, window_bounds = array<i64: 32, 1>}, {pipeline_mode = #tpu.pipeline_mode<synchronous>, transform_indices = @transform_18, window_bounds = array<i64: 32, 32>}, {pipeline_mode = #tpu.pipeline_mode<synchronous>, transform_indices = @transform_19, window_bounds = array<i64: 32, 1>}, {pipeline_mode = #tpu.pipeline_mode<synchronous>, transform_indices = @transform_20, window_bounds = array<i64: 32, 32>}, {pipeline_mode = #tpu.pipeline_mode<synchronous>, transform_indices = @transform_21, window_bounds = array<i64: 32, 1>}, {pipeline_mode = #tpu.pipeline_mode<synchronous>, transform_indices = @transform_22, window_bounds = array<i64: 5, 32>}, {pipeline_mode = #tpu.pipeline_mode<synchronous>, transform_indices = @transform_23, window_bounds = array<i64: 5, 1>}, {transform_indices = @transform_24, window_bounds = array<i64: 5, 128>}]} {
    %0 = tpu.iota {dimensions = array<i32: 0>} : vector<52x128xi32>
    %c0 = arith.constant 0 : index
    %c0_0 = arith.constant 0 : index
    %1 = vector.load %arg7[%c0, %c0_0] : memref<32x1xf32, #tpu.memory_space<vmem>>, vector<32x1xf32>
    %cst = arith.constant 0.000000e+00 : f32
    %2 = vector.broadcast %cst : f32 to vector<52x128xf32>
    %c0_1 = arith.constant 0 : index
    %c0_2 = arith.constant 0 : index
    %3 = vector.load %arg1[%c0_1, %c0_2] : memref<7x128xi32, #tpu.memory_space<vmem>>, vector<1x128xi32>
    %4 = vector.broadcast %3 : vector<1x128xi32> to vector<52x128xi32>
    %5 = arith.cmpi eq, %0, %4 : vector<52x128xi32>
    %c0_i32 = arith.constant 0 : i32
    %6 = vector.broadcast %c0_i32 : i32 to vector<1x128xi32>
    %7 = arith.cmpi sge, %3, %6 : vector<1x128xi32>
    %8 = vector.broadcast %7 : vector<1x128xi1> to vector<52x128xi1>
    %9 = arith.andi %5, %8 : vector<52x128xi1>
    %10 = arith.extui %9 : vector<52x128xi1> to vector<52x128xi32>
    %11 = arith.sitofp %10 : vector<52x128xi32> to vector<52x128xf32>
    %12 = arith.addf %2, %11 : vector<52x128xf32>
    %c1 = arith.constant 1 : index
    %c0_3 = arith.constant 0 : index
    %13 = vector.load %arg1[%c1, %c0_3] : memref<7x128xi32, #tpu.memory_space<vmem>>, vector<1x128xi32>
    %14 = vector.broadcast %13 : vector<1x128xi32> to vector<52x128xi32>
    %15 = arith.cmpi eq, %0, %14 : vector<52x128xi32>
    %c0_i32_4 = arith.constant 0 : i32
    %16 = vector.broadcast %c0_i32_4 : i32 to vector<1x128xi32>
    %17 = arith.cmpi sge, %13, %16 : vector<1x128xi32>
    %18 = vector.broadcast %17 : vector<1x128xi1> to vector<52x128xi1>
    %19 = arith.andi %15, %18 : vector<52x128xi1>
    %20 = arith.extui %19 : vector<52x128xi1> to vector<52x128xi32>
    %21 = arith.sitofp %20 : vector<52x128xi32> to vector<52x128xf32>
    %22 = arith.addf %12, %21 : vector<52x128xf32>
    %23 = arith.truncf %22 : vector<52x128xf32> to vector<52x128xbf16>
    %c0_5 = arith.constant 0 : index
    %c0_6 = arith.constant 0 : index
    %24 = vector.load %arg3[%c0_5, %c0_6] : memref<32x52xbf16, #tpu.memory_space<vmem>>, vector<32x52xbf16>
    %cst_7 = arith.constant dense<0.000000e+00> : vector<32x128xf32>
    %25 = tpu.matmul %24, %23, %cst_7 {dimension_numbers = #tpu.dot_dimension_numbers<[1], [0], [0], [1], [0, 0, 1, 1], [], []>} : vector<32x52xbf16>, vector<52x128xbf16>, vector<32x128xf32> -> vector<32x128xf32>
    %26 = vector.broadcast %1 : vector<32x1xf32> to vector<32x128xf32>
    %27 = arith.addf %26, %25 : vector<32x128xf32>
    %cst_8 = arith.constant 0.000000e+00 : f32
    %28 = vector.broadcast %cst_8 : f32 to vector<52x128xf32>
    %c2 = arith.constant 2 : index
    %c0_9 = arith.constant 0 : index
    %29 = vector.load %arg1[%c2, %c0_9] : memref<7x128xi32, #tpu.memory_space<vmem>>, vector<1x128xi32>
    %30 = vector.broadcast %29 : vector<1x128xi32> to vector<52x128xi32>
    %31 = arith.cmpi eq, %0, %30 : vector<52x128xi32>
    %c0_i32_10 = arith.constant 0 : i32
    %32 = vector.broadcast %c0_i32_10 : i32 to vector<1x128xi32>
    %33 = arith.cmpi sge, %29, %32 : vector<1x128xi32>
    %34 = vector.broadcast %33 : vector<1x128xi1> to vector<52x128xi1>
    %35 = arith.andi %31, %34 : vector<52x128xi1>
    %36 = arith.extui %35 : vector<52x128xi1> to vector<52x128xi32>
    %37 = arith.sitofp %36 : vector<52x128xi32> to vector<52x128xf32>
    %38 = arith.addf %28, %37 : vector<52x128xf32>
    %c3 = arith.constant 3 : index
    %c0_11 = arith.constant 0 : index
    %39 = vector.load %arg1[%c3, %c0_11] : memref<7x128xi32, #tpu.memory_space<vmem>>, vector<1x128xi32>
    %40 = vector.broadcast %39 : vector<1x128xi32> to vector<52x128xi32>
    %41 = arith.cmpi eq, %0, %40 : vector<52x128xi32>
    %c0_i32_12 = arith.constant 0 : i32
    %42 = vector.broadcast %c0_i32_12 : i32 to vector<1x128xi32>
    %43 = arith.cmpi sge, %39, %42 : vector<1x128xi32>
    %44 = vector.broadcast %43 : vector<1x128xi1> to vector<52x128xi1>
    %45 = arith.andi %41, %44 : vector<52x128xi1>
    %46 = arith.extui %45 : vector<52x128xi1> to vector<52x128xi32>
    %47 = arith.sitofp %46 : vector<52x128xi32> to vector<52x128xf32>
    %48 = arith.addf %38, %47 : vector<52x128xf32>
    %c4 = arith.constant 4 : index
    %c0_13 = arith.constant 0 : index
    %49 = vector.load %arg1[%c4, %c0_13] : memref<7x128xi32, #tpu.memory_space<vmem>>, vector<1x128xi32>
    %50 = vector.broadcast %49 : vector<1x128xi32> to vector<52x128xi32>
    %51 = arith.cmpi eq, %0, %50 : vector<52x128xi32>
    %c0_i32_14 = arith.constant 0 : i32
    %52 = vector.broadcast %c0_i32_14 : i32 to vector<1x128xi32>
    %53 = arith.cmpi sge, %49, %52 : vector<1x128xi32>
    %54 = vector.broadcast %53 : vector<1x128xi1> to vector<52x128xi1>
    %55 = arith.andi %51, %54 : vector<52x128xi1>
    %56 = arith.extui %55 : vector<52x128xi1> to vector<52x128xi32>
    %57 = arith.sitofp %56 : vector<52x128xi32> to vector<52x128xf32>
    %58 = arith.addf %48, %57 : vector<52x128xf32>
    %59 = arith.truncf %58 : vector<52x128xf32> to vector<52x128xbf16>
    %c0_15 = arith.constant 0 : index
    %c0_16 = arith.constant 0 : index
    %60 = vector.load %arg4[%c0_15, %c0_16] : memref<32x52xbf16, #tpu.memory_space<vmem>>, vector<32x52xbf16>
    %cst_17 = arith.constant dense<0.000000e+00> : vector<32x128xf32>
    %61 = tpu.matmul %60, %59, %cst_17 {dimension_numbers = #tpu.dot_dimension_numbers<[1], [0], [0], [1], [0, 0, 1, 1], [], []>} : vector<32x52xbf16>, vector<52x128xbf16>, vector<32x128xf32> -> vector<32x128xf32>
    %62 = arith.addf %27, %61 : vector<32x128xf32>
    %cst_18 = arith.constant 0.000000e+00 : f32
    %63 = vector.broadcast %cst_18 : f32 to vector<52x128xf32>
    %c5 = arith.constant 5 : index
    %c0_19 = arith.constant 0 : index
    %64 = vector.load %arg1[%c5, %c0_19] : memref<7x128xi32, #tpu.memory_space<vmem>>, vector<1x128xi32>
    %65 = vector.broadcast %64 : vector<1x128xi32> to vector<52x128xi32>
    %66 = arith.cmpi eq, %0, %65 : vector<52x128xi32>
    %c0_i32_20 = arith.constant 0 : i32
    %67 = vector.broadcast %c0_i32_20 : i32 to vector<1x128xi32>
    %68 = arith.cmpi sge, %64, %67 : vector<1x128xi32>
    %69 = vector.broadcast %68 : vector<1x128xi1> to vector<52x128xi1>
    %70 = arith.andi %66, %69 : vector<52x128xi1>
    %71 = arith.extui %70 : vector<52x128xi1> to vector<52x128xi32>
    %72 = arith.sitofp %71 : vector<52x128xi32> to vector<52x128xf32>
    %73 = arith.addf %63, %72 : vector<52x128xf32>
    %74 = arith.truncf %73 : vector<52x128xf32> to vector<52x128xbf16>
    %c0_21 = arith.constant 0 : index
    %c0_22 = arith.constant 0 : index
    %75 = vector.load %arg5[%c0_21, %c0_22] : memref<32x52xbf16, #tpu.memory_space<vmem>>, vector<32x52xbf16>
    %cst_23 = arith.constant dense<0.000000e+00> : vector<32x128xf32>
    %76 = tpu.matmul %75, %74, %cst_23 {dimension_numbers = #tpu.dot_dimension_numbers<[1], [0], [0], [1], [0, 0, 1, 1], [], []>} : vector<32x52xbf16>, vector<52x128xbf16>, vector<32x128xf32> -> vector<32x128xf32>
    %77 = arith.addf %62, %76 : vector<32x128xf32>
    %cst_24 = arith.constant 0.000000e+00 : f32
    %78 = vector.broadcast %cst_24 : f32 to vector<52x128xf32>
    %c6 = arith.constant 6 : index
    %c0_25 = arith.constant 0 : index
    %79 = vector.load %arg1[%c6, %c0_25] : memref<7x128xi32, #tpu.memory_space<vmem>>, vector<1x128xi32>
    %80 = vector.broadcast %79 : vector<1x128xi32> to vector<52x128xi32>
    %81 = arith.cmpi eq, %0, %80 : vector<52x128xi32>
    %c0_i32_26 = arith.constant 0 : i32
    %82 = vector.broadcast %c0_i32_26 : i32 to vector<1x128xi32>
    %83 = arith.cmpi sge, %79, %82 : vector<1x128xi32>
    %84 = vector.broadcast %83 : vector<1x128xi1> to vector<52x128xi1>
    %85 = arith.andi %81, %84 : vector<52x128xi1>
    %86 = arith.extui %85 : vector<52x128xi1> to vector<52x128xi32>
    %87 = arith.sitofp %86 : vector<52x128xi32> to vector<52x128xf32>
    %88 = arith.addf %78, %87 : vector<52x128xf32>
    %89 = arith.truncf %88 : vector<52x128xf32> to vector<52x128xbf16>
    %c0_27 = arith.constant 0 : index
    %c0_28 = arith.constant 0 : index
    %90 = vector.load %arg6[%c0_27, %c0_28] : memref<32x52xbf16, #tpu.memory_space<vmem>>, vector<32x52xbf16>
    %cst_29 = arith.constant dense<0.000000e+00> : vector<32x128xf32>
    %91 = tpu.matmul %90, %89, %cst_29 {dimension_numbers = #tpu.dot_dimension_numbers<[1], [0], [0], [1], [0, 0, 1, 1], [], []>} : vector<32x52xbf16>, vector<52x128xbf16>, vector<32x128xf32> -> vector<32x128xf32>
    %92 = arith.addf %77, %91 : vector<32x128xf32>
    %cst_30 = arith.constant 0.000000e+00 : f32
    %93 = vector.broadcast %cst_30 : f32 to vector<32x128xf32>
    %94 = arith.maximumf %92, %93 : vector<32x128xf32>
    %c0_31 = arith.constant 0 : index
    %c0_32 = arith.constant 0 : index
    %95 = vector.load %arg8[%c0_31, %c0_32] : memref<32x32xbf16, #tpu.memory_space<vmem>>, vector<32x32xbf16>
    %96 = arith.truncf %94 : vector<32x128xf32> to vector<32x128xbf16>
    %cst_33 = arith.constant dense<0.000000e+00> : vector<32x128xf32>
    %97 = tpu.matmul %95, %96, %cst_33 {dimension_numbers = #tpu.dot_dimension_numbers<[1], [0], [0], [1], [0, 0, 1, 1], [], []>} : vector<32x32xbf16>, vector<32x128xbf16>, vector<32x128xf32> -> vector<32x128xf32>
    %c0_34 = arith.constant 0 : index
    %c0_35 = arith.constant 0 : index
    %98 = vector.load %arg9[%c0_34, %c0_35] : memref<32x1xf32, #tpu.memory_space<vmem>>, vector<32x1xf32>
    %99 = vector.broadcast %98 : vector<32x1xf32> to vector<32x128xf32>
    %100 = arith.addf %97, %99 : vector<32x128xf32>
    %cst_36 = arith.constant 0.000000e+00 : f32
    %101 = vector.broadcast %cst_36 : f32 to vector<32x128xf32>
    %102 = arith.maximumf %100, %101 : vector<32x128xf32>
    %c0_37 = arith.constant 0 : index
    %c0_38 = arith.constant 0 : index
    %103 = vector.load %arg10[%c0_37, %c0_38] : memref<32x32xbf16, #tpu.memory_space<vmem>>, vector<32x32xbf16>
    %104 = arith.truncf %102 : vector<32x128xf32> to vector<32x128xbf16>
    %cst_39 = arith.constant dense<0.000000e+00> : vector<32x128xf32>
    %105 = tpu.matmul %103, %104, %cst_39 {dimension_numbers = #tpu.dot_dimension_numbers<[1], [0], [0], [1], [0, 0, 1, 1], [], []>} : vector<32x32xbf16>, vector<32x128xbf16>, vector<32x128xf32> -> vector<32x128xf32>
    %c0_40 = arith.constant 0 : index
    %c0_41 = arith.constant 0 : index
    %106 = vector.load %arg11[%c0_40, %c0_41] : memref<32x1xf32, #tpu.memory_space<vmem>>, vector<32x1xf32>
    %107 = vector.broadcast %106 : vector<32x1xf32> to vector<32x128xf32>
    %108 = arith.addf %105, %107 : vector<32x128xf32>
    %cst_42 = arith.constant 0.000000e+00 : f32
    %109 = vector.broadcast %cst_42 : f32 to vector<32x128xf32>
    %110 = arith.maximumf %108, %109 : vector<32x128xf32>
    %c0_43 = arith.constant 0 : index
    %c0_44 = arith.constant 0 : index
    %111 = vector.load %arg2[%c0_43, %c0_44] : memref<16x128xbf16, #tpu.memory_space<vmem>>, vector<16x128xbf16>
    %c0_45 = arith.constant 0 : index
    %c0_46 = arith.constant 0 : index
    %112 = vector.load %arg12[%c0_45, %c0_46] : memref<32x16xbf16, #tpu.memory_space<vmem>>, vector<32x16xbf16>
    %cst_47 = arith.constant dense<0.000000e+00> : vector<32x128xf32>
    %113 = tpu.matmul %112, %111, %cst_47 {dimension_numbers = #tpu.dot_dimension_numbers<[1], [0], [0], [1], [0, 0, 1, 1], [], []>} : vector<32x16xbf16>, vector<16x128xbf16>, vector<32x128xf32> -> vector<32x128xf32>
    %c0_48 = arith.constant 0 : index
    %c0_49 = arith.constant 0 : index
    %114 = vector.load %arg13[%c0_48, %c0_49] : memref<32x1xf32, #tpu.memory_space<vmem>>, vector<32x1xf32>
    %115 = vector.broadcast %114 : vector<32x1xf32> to vector<32x128xf32>
    %116 = arith.addf %113, %115 : vector<32x128xf32>
    %cst_50 = arith.constant 0.000000e+00 : f32
    %117 = vector.broadcast %cst_50 : f32 to vector<32x128xf32>
    %118 = arith.maximumf %116, %117 : vector<32x128xf32>
    %c0_51 = arith.constant 0 : index
    %c0_52 = arith.constant 0 : index
    %119 = vector.load %arg14[%c0_51, %c0_52] : memref<32x32xbf16, #tpu.memory_space<vmem>>, vector<32x32xbf16>
    %120 = arith.truncf %118 : vector<32x128xf32> to vector<32x128xbf16>
    %cst_53 = arith.constant dense<0.000000e+00> : vector<32x128xf32>
    %121 = tpu.matmul %119, %120, %cst_53 {dimension_numbers = #tpu.dot_dimension_numbers<[1], [0], [0], [1], [0, 0, 1, 1], [], []>} : vector<32x32xbf16>, vector<32x128xbf16>, vector<32x128xf32> -> vector<32x128xf32>
    %c0_54 = arith.constant 0 : index
    %c0_55 = arith.constant 0 : index
    %122 = vector.load %arg15[%c0_54, %c0_55] : memref<32x1xf32, #tpu.memory_space<vmem>>, vector<32x1xf32>
    %123 = vector.broadcast %122 : vector<32x1xf32> to vector<32x128xf32>
    %124 = arith.addf %121, %123 : vector<32x128xf32>
    %125 = arith.addf %124, %118 : vector<32x128xf32>
    %cst_56 = arith.constant 0.000000e+00 : f32
    %126 = vector.broadcast %cst_56 : f32 to vector<32x128xf32>
    %127 = arith.maximumf %125, %126 : vector<32x128xf32>
    %c0_57 = arith.constant 0 : index
    %c0_58 = arith.constant 0 : index
    %128 = vector.load %arg16[%c0_57, %c0_58] : memref<32x32xbf16, #tpu.memory_space<vmem>>, vector<32x32xbf16>
    %129 = arith.truncf %110 : vector<32x128xf32> to vector<32x128xbf16>
    %cst_59 = arith.constant dense<0.000000e+00> : vector<32x128xf32>
    %130 = tpu.matmul %128, %129, %cst_59 {dimension_numbers = #tpu.dot_dimension_numbers<[1], [0], [0], [1], [0, 0, 1, 1], [], []>} : vector<32x32xbf16>, vector<32x128xbf16>, vector<32x128xf32> -> vector<32x128xf32>
    %c0_60 = arith.constant 0 : index
    %c0_61 = arith.constant 0 : index
    %131 = vector.load %arg17[%c0_60, %c0_61] : memref<32x32xbf16, #tpu.memory_space<vmem>>, vector<32x32xbf16>
    %132 = arith.truncf %127 : vector<32x128xf32> to vector<32x128xbf16>
    %cst_62 = arith.constant dense<0.000000e+00> : vector<32x128xf32>
    %133 = tpu.matmul %131, %132, %cst_62 {dimension_numbers = #tpu.dot_dimension_numbers<[1], [0], [0], [1], [0, 0, 1, 1], [], []>} : vector<32x32xbf16>, vector<32x128xbf16>, vector<32x128xf32> -> vector<32x128xf32>
    %134 = arith.addf %130, %133 : vector<32x128xf32>
    %c0_63 = arith.constant 0 : index
    %c0_64 = arith.constant 0 : index
    %135 = vector.load %arg18[%c0_63, %c0_64] : memref<32x1xf32, #tpu.memory_space<vmem>>, vector<32x1xf32>
    %136 = vector.broadcast %135 : vector<32x1xf32> to vector<32x128xf32>
    %137 = arith.addf %134, %136 : vector<32x128xf32>
    %cst_65 = arith.constant 0.000000e+00 : f32
    %138 = vector.broadcast %cst_65 : f32 to vector<32x128xf32>
    %139 = arith.maximumf %137, %138 : vector<32x128xf32>
    %c0_66 = arith.constant 0 : index
    %c0_67 = arith.constant 0 : index
    %140 = vector.load %arg19[%c0_66, %c0_67] : memref<32x32xbf16, #tpu.memory_space<vmem>>, vector<32x32xbf16>
    %141 = arith.truncf %139 : vector<32x128xf32> to vector<32x128xbf16>
    %cst_68 = arith.constant dense<0.000000e+00> : vector<32x128xf32>
    %142 = tpu.matmul %140, %141, %cst_68 {dimension_numbers = #tpu.dot_dimension_numbers<[1], [0], [0], [1], [0, 0, 1, 1], [], []>} : vector<32x32xbf16>, vector<32x128xbf16>, vector<32x128xf32> -> vector<32x128xf32>
    %c0_69 = arith.constant 0 : index
    %c0_70 = arith.constant 0 : index
    %143 = vector.load %arg20[%c0_69, %c0_70] : memref<32x1xf32, #tpu.memory_space<vmem>>, vector<32x1xf32>
    %144 = vector.broadcast %143 : vector<32x1xf32> to vector<32x128xf32>
    %145 = arith.addf %142, %144 : vector<32x128xf32>
    %146 = arith.addf %145, %139 : vector<32x128xf32>
    %cst_71 = arith.constant 0.000000e+00 : f32
    %147 = vector.broadcast %cst_71 : f32 to vector<32x128xf32>
    %148 = arith.maximumf %146, %147 : vector<32x128xf32>
    %c0_72 = arith.constant 0 : index
    %c0_73 = arith.constant 0 : index
    %149 = vector.load %arg21[%c0_72, %c0_73] : memref<32x32xbf16, #tpu.memory_space<vmem>>, vector<32x32xbf16>
    %150 = arith.truncf %148 : vector<32x128xf32> to vector<32x128xbf16>
    %cst_74 = arith.constant dense<0.000000e+00> : vector<32x128xf32>
    %151 = tpu.matmul %149, %150, %cst_74 {dimension_numbers = #tpu.dot_dimension_numbers<[1], [0], [0], [1], [0, 0, 1, 1], [], []>} : vector<32x32xbf16>, vector<32x128xbf16>, vector<32x128xf32> -> vector<32x128xf32>
    %c0_75 = arith.constant 0 : index
    %c0_76 = arith.constant 0 : index
    %152 = vector.load %arg22[%c0_75, %c0_76] : memref<32x1xf32, #tpu.memory_space<vmem>>, vector<32x1xf32>
    %153 = vector.broadcast %152 : vector<32x1xf32> to vector<32x128xf32>
    %154 = arith.addf %151, %153 : vector<32x128xf32>
    %155 = arith.addf %154, %148 : vector<32x128xf32>
    %cst_77 = arith.constant 0.000000e+00 : f32
    %156 = vector.broadcast %cst_77 : f32 to vector<32x128xf32>
    %157 = arith.maximumf %155, %156 : vector<32x128xf32>
    %158 = arith.mulf %157, %157 : vector<32x128xf32>
    %cst_78 = arith.constant dense<0.000000e+00> : vector<128xf32>
    %159 = vector.multi_reduction <add>, %158, %cst_78 [0] : vector<32x128xf32> to vector<128xf32>
    %160 = vector.shape_cast %159 : vector<128xf32> to vector<1x128xf32>
    %161 = math.sqrt %160 : vector<1x128xf32>
    %cst_79 = arith.constant 9.99999996E-13 : f32
    %162 = vector.broadcast %cst_79 : f32 to vector<1x128xf32>
    %163 = arith.maximumf %161, %162 : vector<1x128xf32>
    %164 = tpu.reciprocal %163 {approx = true} : vector<1x128xf32> -> vector<1x128xf32>
    %165 = vector.broadcast %164 : vector<1x128xf32> to vector<32x128xf32>
    %166 = arith.mulf %157, %165 : vector<32x128xf32>
    %c0_80 = arith.constant 0 : index
    %c0_81 = arith.constant 0 : index
    %167 = vector.load %arg23[%c0_80, %c0_81] : memref<5x32xbf16, #tpu.memory_space<vmem>>, vector<5x32xbf16>
    %168 = arith.truncf %166 : vector<32x128xf32> to vector<32x128xbf16>
    %cst_82 = arith.constant dense<0.000000e+00> : vector<5x128xf32>
    %169 = tpu.matmul %167, %168, %cst_82 {dimension_numbers = #tpu.dot_dimension_numbers<[1], [0], [0], [1], [0, 0, 1, 1], [], []>} : vector<5x32xbf16>, vector<32x128xbf16>, vector<5x128xf32> -> vector<5x128xf32>
    %c0_83 = arith.constant 0 : index
    %c0_84 = arith.constant 0 : index
    %170 = vector.load %arg24[%c0_83, %c0_84] : memref<5x1xf32, #tpu.memory_space<vmem>>, vector<5x1xf32>
    %171 = vector.broadcast %170 : vector<5x1xf32> to vector<5x128xf32>
    %172 = arith.addf %169, %171 : vector<5x128xf32>
    %c0_85 = arith.constant 0 : index
    %c0_86 = arith.constant 0 : index
    %173 = vector.load %arg25[%c0_85, %c0_86] : memref<5x128xf32, #tpu.memory_space<vmem>>, vector<5x128xf32>
    tpu.vector_store %arg25[%c0_85, %c0_86], %172 {strides = array<i32>} : memref<5x128xf32, #tpu.memory_space<vmem>>, vector<5x128xf32>,
    return
  }
  func.func @transform_0(%arg0: i32) -> (i32, i32) {
    %c0_i32 = arith.constant 0 : i32
    %c0_i32_0 = arith.constant 0 : i32
    return %c0_i32, %arg0 : i32, i32
  }
  func.func @transform_1(%arg0: i32) -> (i32, i32) {
    %c0_i32 = arith.constant 0 : i32
    %c0_i32_0 = arith.constant 0 : i32
    return %c0_i32, %arg0 : i32, i32
  }
  func.func @transform_2(%arg0: i32) -> (i32, i32) {
    %c0_i32 = arith.constant 0 : i32
    %c0_i32_0 = arith.constant 0 : i32
    %c0_i32_1 = arith.constant 0 : i32
    return %c0_i32, %c0_i32_0 : i32, i32
  }
  func.func @transform_3(%arg0: i32) -> (i32, i32) {
    %c0_i32 = arith.constant 0 : i32
    %c0_i32_0 = arith.constant 0 : i32
    %c0_i32_1 = arith.constant 0 : i32
    return %c0_i32, %c0_i32_0 : i32, i32
  }
  func.func @transform_4(%arg0: i32) -> (i32, i32) {
    %c0_i32 = arith.constant 0 : i32
    %c0_i32_0 = arith.constant 0 : i32
    %c0_i32_1 = arith.constant 0 : i32
    return %c0_i32, %c0_i32_0 : i32, i32
  }
  func.func @transform_5(%arg0: i32) -> (i32, i32) {
    %c0_i32 = arith.constant 0 : i32
    %c0_i32_0 = arith.constant 0 : i32
    %c0_i32_1 = arith.constant 0 : i32
    return %c0_i32, %c0_i32_0 : i32, i32
  }
  func.func @transform_6(%arg0: i32) -> (i32, i32) {
    %c0_i32 = arith.constant 0 : i32
    %c0_i32_0 = arith.constant 0 : i32
    %c0_i32_1 = arith.constant 0 : i32
    return %c0_i32, %c0_i32_0 : i32, i32
  }
  func.func @transform_7(%arg0: i32) -> (i32, i32) {
    %c0_i32 = arith.constant 0 : i32
    %c0_i32_0 = arith.constant 0 : i32
    %c0_i32_1 = arith.constant 0 : i32
    return %c0_i32, %c0_i32_0 : i32, i32
  }
  func.func @transform_8(%arg0: i32) -> (i32, i32) {
    %c0_i32 = arith.constant 0 : i32
    %c0_i32_0 = arith.constant 0 : i32
    %c0_i32_1 = arith.constant 0 : i32
    return %c0_i32, %c0_i32_0 : i32, i32
  }
  func.func @transform_9(%arg0: i32) -> (i32, i32) {
    %c0_i32 = arith.constant 0 : i32
    %c0_i32_0 = arith.constant 0 : i32
    %c0_i32_1 = arith.constant 0 : i32
    return %c0_i32, %c0_i32_0 : i32, i32
  }
  func.func @transform_10(%arg0: i32) -> (i32, i32) {
    %c0_i32 = arith.constant 0 : i32
    %c0_i32_0 = arith.constant 0 : i32
    %c0_i32_1 = arith.constant 0 : i32
    return %c0_i32, %c0_i32_0 : i32, i32
  }
  func.func @transform_11(%arg0: i32) -> (i32, i32) {
    %c0_i32 = arith.constant 0 : i32
    %c0_i32_0 = arith.constant 0 : i32
    %c0_i32_1 = arith.constant 0 : i32
    return %c0_i32, %c0_i32_0 : i32, i32
  }
  func.func @transform_12(%arg0: i32) -> (i32, i32) {
    %c0_i32 = arith.constant 0 : i32
    %c0_i32_0 = arith.constant 0 : i32
    %c0_i32_1 = arith.constant 0 : i32
    return %c0_i32, %c0_i32_0 : i32, i32
  }
  func.func @transform_13(%arg0: i32) -> (i32, i32) {
    %c0_i32 = arith.constant 0 : i32
    %c0_i32_0 = arith.constant 0 : i32
    %c0_i32_1 = arith.constant 0 : i32
    return %c0_i32, %c0_i32_0 : i32, i32
  }
  func.func @transform_14(%arg0: i32) -> (i32, i32) {
    %c0_i32 = arith.constant 0 : i32
    %c0_i32_0 = arith.constant 0 : i32
    %c0_i32_1 = arith.constant 0 : i32
    return %c0_i32, %c0_i32_0 : i32, i32
  }
  func.func @transform_15(%arg0: i32) -> (i32, i32) {
    %c0_i32 = arith.constant 0 : i32
    %c0_i32_0 = arith.constant 0 : i32
    %c0_i32_1 = arith.constant 0 : i32
    return %c0_i32, %c0_i32_0 : i32, i32
  }
  func.func @transform_16(%arg0: i32) -> (i32, i32) {
    %c0_i32 = arith.constant 0 : i32
    %c0_i32_0 = arith.constant 0 : i32
    %c0_i32_1 = arith.constant 0 : i32
    return %c0_i32, %c0_i32_0 : i32, i32
  }
  func.func @transform_17(%arg0: i32) -> (i32, i32) {
    %c0_i32 = arith.constant 0 : i32
    %c0_i32_0 = arith.constant 0 : i32
    %c0_i32_1 = arith.constant 0 : i32
    return %c0_i32, %c0_i32_0 : i32, i32
  }
  func.func @transform_18(%arg0: i32) -> (i32, i32) {
    %c0_i32 = arith.constant 0 : i32
    %c0_i32_0 = arith.constant 0 : i32
    %c0_i32_1 = arith.constant 0 : i32
    return %c0_i32, %c0_i32_0 : i32, i32
  }
  func.func @transform_19(%arg0: i32) -> (i32, i32) {
    %c0_i32 = arith.constant 0 : i32
    %c0_i32_0 = arith.constant 0 : i32
    %c0_i32_1 = arith.constant 0 : i32
    return %c0_i32, %c0_i32_0 : i32, i32
  }
  func.func @transform_20(%arg0: i32) -> (i32, i32) {
    %c0_i32 = arith.constant 0 : i32
    %c0_i32_0 = arith.constant 0 : i32
    %c0_i32_1 = arith.constant 0 : i32
    return %c0_i32, %c0_i32_0 : i32, i32
  }
  func.func @transform_21(%arg0: i32) -> (i32, i32) {
    %c0_i32 = arith.constant 0 : i32
    %c0_i32_0 = arith.constant 0 : i32
    %c0_i32_1 = arith.constant 0 : i32
    return %c0_i32, %c0_i32_0 : i32, i32
  }
  func.func @transform_22(%arg0: i32) -> (i32, i32) {
    %c0_i32 = arith.constant 0 : i32
    %c0_i32_0 = arith.constant 0 : i32
    %c0_i32_1 = arith.constant 0 : i32
    return %c0_i32, %c0_i32_0 : i32, i32
  }
  func.func @transform_23(%arg0: i32) -> (i32, i32) {
    %c0_i32 = arith.constant 0 : i32
    %c0_i32_0 = arith.constant 0 : i32
    %c0_i32_1 = arith.constant 0 : i32
    return %c0_i32, %c0_i32_0 : i32, i32
  }
  func.func @transform_24(%arg0: i32) -> (i32, i32) {
    %c0_i32 = arith.constant 0 : i32
    %c0_i32_0 = arith.constant 0 : i32
    return %c0_i32, %arg0 : i32, i32
  }
}

</mosaic_0001>

<llo_original>
// kernel: tpu_custom_call.1
$region0: #{tpu_custom_call.1}
  #allocation0 [shape = 'u32[]', space=smem, size = 0x4, offset = 0x4, fixed_abs, tag = 'smem constant byte address 0x4 - core index']
  #allocation1 [shape = 'u32[144,128]{1,0:T(1,128)}', space=vmem, size = 0x12000, scoped, tag = 'internal scratch']
  %s0 = inlined_call_operand.vmem [shape: s32[7,128], index: 0, kind: input, shape index: {}]
  %s1 = inlined_call_operand.vmem [shape: bf16[16,128], index: 1, kind: input, shape index: {}]
  %s2 = inlined_call_operand.vmem [shape: bf16[32,52], index: 2, kind: input, shape index: {}]
  %s3 = inlined_call_operand.vmem [shape: bf16[32,52], index: 3, kind: input, shape index: {}]
  %s4 = inlined_call_operand.vmem [shape: bf16[32,52], index: 4, kind: input, shape index: {}]
  %s5 = inlined_call_operand.vmem [shape: bf16[32,52], index: 5, kind: input, shape index: {}]
  %s6 = inlined_call_operand.vmem [shape: f32[32,1], index: 6, kind: input, shape index: {}]
  %s7 = inlined_call_operand.vmem [shape: bf16[32,32], index: 7, kind: input, shape index: {}]
  %s8 = inlined_call_operand.vmem [shape: f32[32,1], index: 8, kind: input, shape index: {}]
  %s9 = inlined_call_operand.vmem [shape: bf16[32,32], index: 9, kind: input, shape index: {}]
  %s10 = inlined_call_operand.vmem [shape: f32[32,1], index: 10, kind: input, shape index: {}]
  %s11 = inlined_call_operand.vmem [shape: bf16[32,16], index: 11, kind: input, shape index: {}]
  %s12 = inlined_call_operand.vmem [shape: f32[32,1], index: 12, kind: input, shape index: {}]
  %s13 = inlined_call_operand.vmem [shape: bf16[32,32], index: 13, kind: input, shape index: {}]
  %s14 = inlined_call_operand.vmem [shape: f32[32,1], index: 14, kind: input, shape index: {}]
  %s15 = inlined_call_operand.vmem [shape: bf16[32,32], index: 15, kind: input, shape index: {}]
  %s16 = inlined_call_operand.vmem [shape: bf16[32,32], index: 16, kind: input, shape index: {}]
  %s17 = inlined_call_operand.vmem [shape: f32[32,1], index: 17, kind: input, shape index: {}]
  %s18 = inlined_call_operand.vmem [shape: bf16[32,32], index: 18, kind: input, shape index: {}]
  %s19 = inlined_call_operand.vmem [shape: f32[32,1], index: 19, kind: input, shape index: {}]
  %s20 = inlined_call_operand.vmem [shape: bf16[32,32], index: 20, kind: input, shape index: {}]
  %s21 = inlined_call_operand.vmem [shape: f32[32,1], index: 21, kind: input, shape index: {}]
  %s22 = inlined_call_operand.vmem [shape: bf16[5,32], index: 22, kind: input, shape index: {}]
  %s23 = inlined_call_operand.vmem [shape: f32[5,1], index: 23, kind: input, shape index: {}]
  %s24 = inlined_call_operand.hbm [shape: f32[5,128], index: 24, kind: output, shape index: {}]
  %s25 = sld [smem:[#allocation0]]
  $region106: #{tpu_custom_call.1} parent=0
    _
  %s27 = ssub.s32 1, %s25
  %s28 = scalar_select 0, %s27, %s25
  $region1: #{tpu_custom_call.1} parent=0
    #allocation2 [shape = 'u8[4096]{0}', space=vmem, size = 0x1000, scoped, tag = 'output window, operand 0, single buffered']
    #allocation3 [shape = 's32[1]{0}', space=sflag, size = 0x4, scoped, tag = 'scoped memory for tpu_custom_call.1']
    %29 = vsyncpa [#allocation3], 0
    // Predicated region
    $region2: #{tpu_custom_call.1} parent=1 // pred_check
      _
    $region3: #{tpu_custom_call.1} parent=1 // pred_check_branch
      %31 = sbr.rel (0) target = $region5
    $region4: #{tpu_custom_call.1} parent=1 // pred_region
      _
    $region5: #{tpu_custom_call.1} parent=1 // pred_fallthru
      _
    // Predicated region
    $region6: #{tpu_custom_call.1} parent=1 // pred_check
      _
    $region7: #{tpu_custom_call.1} parent=1 // pred_check_branch
      %33 = sbr.rel (0) target = $region9
    $region8: #{tpu_custom_call.1} parent=1 // pred_region
      _
    $region9: #{tpu_custom_call.1} parent=1 // pred_fallthru
      _
    // Predicated region
    $region10: #{tpu_custom_call.1} parent=1 // pred_check
      _
    $region11: #{tpu_custom_call.1} parent=1 // pred_check_branch
      %35 = sbr.rel (0) target = $region13
    $region12: #{tpu_custom_call.1} parent=1 // pred_region
      _
    $region13: #{tpu_custom_call.1} parent=1 // pred_fallthru
      _
    // Predicated region
    $region14: #{tpu_custom_call.1} parent=1 // pred_check
      _
    $region15: #{tpu_custom_call.1} parent=1 // pred_check_branch
      %37 = sbr.rel (0) target = $region17
    $region16: #{tpu_custom_call.1} parent=1 // pred_region
      _
    $region17: #{tpu_custom_call.1} parent=1 // pred_fallthru
      _
    // Predicated region
    $region18: #{tpu_custom_call.1} parent=1 // pred_check
      _
    $region19: #{tpu_custom_call.1} parent=1 // pred_check_branch
      %39 = sbr.rel (0) target = $region21
    $region20: #{tpu_custom_call.1} parent=1 // pred_region
      _
    $region21: #{tpu_custom_call.1} parent=1 // pred_fallthru
      _
    // Predicated region
    $region22: #{tpu_custom_call.1} parent=1 // pred_check
      _
    $region23: #{tpu_custom_call.1} parent=1 // pred_check_branch
      %41 = sbr.rel (0) target = $region25
    $region24: #{tpu_custom_call.1} parent=1 // pred_region
      _
    $region25: #{tpu_custom_call.1} parent=1 // pred_fallthru
      _
    // Predicated region
    $region26: #{tpu_custom_call.1} parent=1 // pred_check
      _
    $region27: #{tpu_custom_call.1} parent=1 // pred_check_branch
      %43 = sbr.rel (0) target = $region29
    $region28: #{tpu_custom_call.1} parent=1 // pred_region
      _
    $region29: #{tpu_custom_call.1} parent=1 // pred_fallthru
      _
    // Predicated region
    $region30: #{tpu_custom_call.1} parent=1 // pred_check
      _
    $region31: #{tpu_custom_call.1} parent=1 // pred_check_branch
      %45 = sbr.rel (0) target = $region33
    $region32: #{tpu_custom_call.1} parent=1 // pred_region
      _
    $region33: #{tpu_custom_call.1} parent=1 // pred_fallthru
      _
    // Predicated region
    $region34: #{tpu_custom_call.1} parent=1 // pred_check
      _
    $region35: #{tpu_custom_call.1} parent=1 // pred_check_branch
      %47 = sbr.rel (0) target = $region37
    $region36: #{tpu_custom_call.1} parent=1 // pred_region
      _
    $region37: #{tpu_custom_call.1} parent=1 // pred_fallthru
      _
    // Predicated region
    $region38: #{tpu_custom_call.1} parent=1 // pred_check
      _
    $region39: #{tpu_custom_call.1} parent=1 // pred_check_branch
      %49 = sbr.rel (0) target = $region41
    $region40: #{tpu_custom_call.1} parent=1 // pred_region
      _
    $region41: #{tpu_custom_call.1} parent=1 // pred_fallthru
      _
    // Predicated region
    $region42: #{tpu_custom_call.1} parent=1 // pred_check
      _
    $region43: #{tpu_custom_call.1} parent=1 // pred_check_branch
      %51 = sbr.rel (0) target = $region45
    $region44: #{tpu_custom_call.1} parent=1 // pred_region
      _
    $region45: #{tpu_custom_call.1} parent=1 // pred_fallthru
      _
    // Predicated region
    $region46: #{tpu_custom_call.1} parent=1 // pred_check
      _
    $region47: #{tpu_custom_call.1} parent=1 // pred_check_branch
      %53 = sbr.rel (0) target = $region49
    $region48: #{tpu_custom_call.1} parent=1 // pred_region
      _
    $region49: #{tpu_custom_call.1} parent=1 // pred_fallthru
      _
    // Predicated region
    $region50: #{tpu_custom_call.1} parent=1 // pred_check
      _
    $region51: #{tpu_custom_call.1} parent=1 // pred_check_branch
      %55 = sbr.rel (0) target = $region53
    $region52: #{tpu_custom_call.1} parent=1 // pred_region
      _
    $region53: #{tpu_custom_call.1} parent=1 // pred_fallthru
      _
    // Predicated region
    $region54: #{tpu_custom_call.1} parent=1 // pred_check
      _
    $region55: #{tpu_custom_call.1} parent=1 // pred_check_branch
      %57 = sbr.rel (0) target = $region57
    $region56: #{tpu_custom_call.1} parent=1 // pred_region
      _
    $region57: #{tpu_custom_call.1} parent=1 // pred_fallthru
      _
    // Predicated region
    $region58: #{tpu_custom_call.1} parent=1 // pred_check
      _
    $region59: #{tpu_custom_call.1} parent=1 // pred_check_branch
      %59 = sbr.rel (0) target = $region61
    $region60: #{tpu_custom_call.1} parent=1 // pred_region
      _
    $region61: #{tpu_custom_call.1} parent=1 // pred_fallthru
      _
    // Predicated region
    $region62: #{tpu_custom_call.1} parent=1 // pred_check
      _
    $region63: #{tpu_custom_call.1} parent=1 // pred_check_branch
      %61 = sbr.rel (0) target = $region65
    $region64: #{tpu_custom_call.1} parent=1 // pred_region
      _
    $region65: #{tpu_custom_call.1} parent=1 // pred_fallthru
      _
    // Predicated region
    $region66: #{tpu_custom_call.1} parent=1 // pred_check
      _
    $region67: #{tpu_custom_call.1} parent=1 // pred_check_branch
      %63 = sbr.rel (0) target = $region69
    $region68: #{tpu_custom_call.1} parent=1 // pred_region
      _
    $region69: #{tpu_custom_call.1} parent=1 // pred_fallthru
      _
    // Predicated region
    $region70: #{tpu_custom_call.1} parent=1 // pred_check
      _
    $region71: #{tpu_custom_call.1} parent=1 // pred_check_branch
      %65 = sbr.rel (0) target = $region73
    $region72: #{tpu_custom_call.1} parent=1 // pred_region
      _
    $region73: #{tpu_custom_call.1} parent=1 // pred_fallthru
      _
    // Predicated region
    $region74: #{tpu_custom_call.1} parent=1 // pred_check
      _
    $region75: #{tpu_custom_call.1} parent=1 // pred_check_branch
      %67 = sbr.rel (0) target = $region77
    $region76: #{tpu_custom_call.1} parent=1 // pred_region
      _
    $region77: #{tpu_custom_call.1} parent=1 // pred_fallthru
      _
    // Predicated region
    $region78: #{tpu_custom_call.1} parent=1 // pred_check
      _
    $region79: #{tpu_custom_call.1} parent=1 // pred_check_branch
      %69 = sbr.rel (0) target = $region81
    $region80: #{tpu_custom_call.1} parent=1 // pred_region
      _
    $region81: #{tpu_custom_call.1} parent=1 // pred_fallthru
      _
    // Predicated region
    $region82: #{tpu_custom_call.1} parent=1 // pred_check
      _
    $region83: #{tpu_custom_call.1} parent=1 // pred_check_branch
      %71 = sbr.rel (0) target = $region85
    $region84: #{tpu_custom_call.1} parent=1 // pred_region
      _
    $region85: #{tpu_custom_call.1} parent=1 // pred_fallthru
      _
    // Predicated region
    $region86: #{tpu_custom_call.1} parent=1 // pred_check
      _
    $region87: #{tpu_custom_call.1} parent=1 // pred_check_branch
      %73 = sbr.rel (0) target = $region89
    $region88: #{tpu_custom_call.1} parent=1 // pred_region
      _
    $region89: #{tpu_custom_call.1} parent=1 // pred_fallthru
      _
    // Predicated region
    $region90: #{tpu_custom_call.1} parent=1 // pred_check
      _
    $region91: #{tpu_custom_call.1} parent=1 // pred_check_branch
      %75 = sbr.rel (0) target = $region93
    $region92: #{tpu_custom_call.1} parent=1 // pred_region
      _
    $region93: #{tpu_custom_call.1} parent=1 // pred_fallthru
      _
    // Predicated region
    $region94: #{tpu_custom_call.1} parent=1 // pred_check
      _
    $region95: #{tpu_custom_call.1} parent=1 // pred_check_branch
      %77 = sbr.rel (0) target = $region97
    $region96: #{tpu_custom_call.1} parent=1 // pred_region
      _
    $region97: #{tpu_custom_call.1} parent=1 // pred_fallthru
      _
    %v79 = vlaneseq
    %v80 = vshrl.u32 %v79, 7
    %v81 = vadd.s32 %v80, 8
    %v82 = vadd.s32 %v80, 16
    %v83 = vadd.s32 %v80, 24
    %v84 = vadd.s32 %v80, 32
    %v85 = vadd.s32 %v80, 40
    %v86 = vadd.s32 %v80, 48
    %v87 = vld [vmem:[%s6] sm:$0xff]
    %v88 = vld [vmem:[%s6 + $0x8] sm:$0xff]
    %v89 = vld [vmem:[%s6 + $0x10] sm:$0xff]
    %v90 = vld [vmem:[%s6 + $0x18] sm:$0xff]
    %v91 = vld [vmem:[%s0] sm:$0x1]
    %v92 = vlaneseq
    %v93 = vshrl.u32 %v92, 7
    %v94 = vsub.s32 0, %v93
    %v95 = vrot.slane %v91, %v94
    %vm96 = vcmp.eq.s32.totalorder %v80, %v95
    %vm97 = vcmp.eq.s32.totalorder %v81, %v95
    %vm98 = vcmp.eq.s32.totalorder %v82, %v95
    %vm99 = vcmp.eq.s32.totalorder %v83, %v95
    %vm100 = vcmp.eq.s32.totalorder %v84, %v95
    %vm101 = vcmp.eq.s32.totalorder %v85, %v95
    %vm102 = vcmp.eq.s32.totalorder %v86, %v95
    %vm103 = vcmp.ge.s32.totalorder %v91, 0
    %v104 = vsel %vm103, 1, 0
    %v105 = vlaneseq
    %v106 = vshrl.u32 %v105, 7
    %v107 = vsub.s32 0, %v106
    %v108 = vrot.slane %v104, %v107
    %vm109 = vcmp.eq.s32.totalorder %v108, 1
    %vm110 = vmand %vm96, %vm109
    %vm111 = vmand %vm97, %vm109
    %vm112 = vmand %vm98, %vm109
    %vm113 = vmand %vm99, %vm109
    %vm114 = vmand %vm100, %vm109
    %vm115 = vmand %vm101, %vm109
    %vm116 = vmand %vm102, %vm109
    %v117 = vsel %vm110, 1, 0
    %v118 = vsel %vm111, 1, 0
    %v119 = vsel %vm112, 1, 0
    %v120 = vsel %vm113, 1, 0
    %v121 = vsel %vm114, 1, 0
    %v122 = vsel %vm115, 1, 0
    %v123 = vsel %vm116, 1, 0
    %v124 = vcvt.s32.f32 %v117
    %v125 = vcvt.s32.f32 %v118
    %v126 = vcvt.s32.f32 %v119
    %v127 = vcvt.s32.f32 %v120
    %v128 = vcvt.s32.f32 %v121
    %v129 = vcvt.s32.f32 %v122
    %v130 = vcvt.s32.f32 %v123
    %v131 = vadd.f32 %v124, 0.0
    %v132 = vadd.f32 %v125, 0.0
    %v133 = vadd.f32 %v126, 0.0
    %v134 = vadd.f32 %v127, 0.0
    %v135 = vadd.f32 %v128, 0.0
    %v136 = vadd.f32 %v129, 0.0
    %v137 = vadd.f32 %v130, 0.0
    %v138 = vld [vmem:[%s0 + $0x1] sm:$0x1]
    %v139 = vlaneseq
    %v140 = vshrl.u32 %v139, 7
    %v141 = vsub.s32 0, %v140
    %v142 = vrot.slane %v138, %v141
    %vm143 = vcmp.eq.s32.totalorder %v80, %v142
    %vm144 = vcmp.eq.s32.totalorder %v81, %v142
    %vm145 = vcmp.eq.s32.totalorder %v82, %v142
    %vm146 = vcmp.eq.s32.totalorder %v83, %v142
    %vm147 = vcmp.eq.s32.totalorder %v84, %v142
    %vm148 = vcmp.eq.s32.totalorder %v85, %v142
    %vm149 = vcmp.eq.s32.totalorder %v86, %v142
    %vm150 = vcmp.ge.s32.totalorder %v138, 0
    %v151 = vsel %vm150, 1, 0
    %v152 = vlaneseq
    %v153 = vshrl.u32 %v152, 7
    %v154 = vsub.s32 0, %v153
    %v155 = vrot.slane %v151, %v154
    %vm156 = vcmp.eq.s32.totalorder %v155, 1
    %vm157 = vmand %vm143, %vm156
    %vm158 = vmand %vm144, %vm156
    %vm159 = vmand %vm145, %vm156
    %vm160 = vmand %vm146, %vm156
    %vm161 = vmand %vm147, %vm156
    %vm162 = vmand %vm148, %vm156
    %vm163 = vmand %vm149, %vm156
    %v164 = vsel %vm157, 1, 0
    %v165 = vsel %vm158, 1, 0
    %v166 = vsel %vm159, 1, 0
    %v167 = vsel %vm160, 1, 0
    %v168 = vsel %vm161, 1, 0
    %v169 = vsel %vm162, 1, 0
    %v170 = vsel %vm163, 1, 0
    %v171 = vcvt.s32.f32 %v164
    %v172 = vcvt.s32.f32 %v165
    %v173 = vcvt.s32.f32 %v166
    %v174 = vcvt.s32.f32 %v167
    %v175 = vcvt.s32.f32 %v168
    %v176 = vcvt.s32.f32 %v169
    %v177 = vcvt.s32.f32 %v170
    %v178 = vadd.f32 %v131, %v171
    %v179 = vadd.f32 %v132, %v172
    %v180 = vadd.f32 %v133, %v173
    %v181 = vadd.f32 %v134, %v174
    %v182 = vadd.f32 %v135, %v175
    %v183 = vadd.f32 %v136, %v176
    %v184 = vadd.f32 %v137, %v177
    %v185 = vpack.c.bf16 %v179, %v178
    %v186 = vpack.c.bf16 %v181, %v180
    %v187 = vpack.c.bf16 %v183, %v182
    %v188 = vpack.c.bf16 %v184, %v184
    %v189 = vld [vmem:[%s2] sm:$0xf]
    %v190 = vld [vmem:[%s2 + $0x4] sm:$0xf]
    %v191 = vld [vmem:[%s2 + $0x8] sm:$0xf]
    %v192 = vld [vmem:[%s2 + $0xc] sm:$0xf]
    %v197 = vunpack.c.l.b16 %v189
    %v198 = vunpack.c.l.b16 %v190
    %v199 = vunpack.c.l.b16 %v191
    %v200 = vunpack.c.l.b16 %v192
    %v201 = vpack.c.b16 %v198, %v197
    %v202 = vpack.c.b16 %v200, %v199
    %vm203 = vcmask 424960
    %v205 = vsel %vm203, %v201, 0
    %v208 = vsel %vm203, %v202, 0
    %vm210 = vcmask 1041408
    %v212 = vsel %vm210, %v188, 0
    %214 = vmatprep.subr.bf16.mxu0 0
    %215 = vmatpush1.bf16.msra.mxu0 %v185
    %216 = vmatprep.subr.bf16.mxu0 0
    %217 = vmatpush1.bf16.msra.mxu0 %v186
    %218 = vmatprep.subr.bf16.mxu0 0
    %219 = vmatpush1.bf16.msra.mxu0 %v187
    %220 = vmatprep.subr.bf16.mxu0 0
    %221 = vmatpush1.bf16.msra.mxu0 %v212
    %222 = vmatprep.subr.bf16.mxu0 0
    %223 = vmatpush1.bf16.msra.mxu0 0
    %224 = vmatprep.subr.bf16.mxu0 0
    %225 = vmatpush1.bf16.msra.mxu0 0
    %226 = vmatprep.subr.bf16.mxu0 0
    %227 = vmatpush1.bf16.msra.mxu0 0
    %228 = vmatprep.subr.bf16.mxu0 0
    %229 = vmatpush1.bf16.msra.mxu0 0
    %230 = vmatprep.subr.bf16.mxu0 0
    %231 = vmatpush1.bf16.msra.mxu0 0
    %232 = vmatprep.subr.bf16.mxu0 0
    %233 = vmatpush1.bf16.msra.mxu0 0
    %234 = vmatprep.subr.bf16.mxu0 0
    %235 = vmatpush1.bf16.msra.mxu0 0
    %236 = vmatprep.subr.bf16.mxu0 0
    %237 = vmatpush1.bf16.msra.mxu0 0
    %238 = vmatprep.subr.bf16.mxu0 0
    %239 = vmatpush1.bf16.msra.mxu0 0
    %240 = vmatprep.subr.bf16.mxu0 0
    %241 = vmatpush1.bf16.msra.mxu0 0
    %242 = vmatprep.subr.bf16.mxu0 0
    %243 = vmatpush1.bf16.msra.mxu0 0
    %244 = vmatprep.subr.bf16.mxu0 0
    %245 = vmatpush1.bf16.msra.mxu0 0
    %246 = vmatprep.mubr.bf16.mxu0 0
    %247 = vmatmul.mubr.bf16.gmra.mrb[0].mxu0 %v205
    %v248 = vpop.f32.mrb[0].mxu0
    %v249 = vadd.f32 0.0, %v248
    %v250 = vpop.f32.mrb[0].mxu0
    %v251 = vpop.f32.mrb[0].mxu0
    %v252 = vadd.f32 0.0, %v251
    %v253 = vpop.f32.mrb[0].mxu0
    %254 = vmatprep.mubr.bf16.mxu0 0
    %255 = vmatmul.mubr.bf16.gmra.mrb[0].mxu0 %v208
    %v256 = vpop.f32.mrb[0].mxu0
    %v257 = vadd.f32 0.0, %v256
    %v258 = vpop.f32.mrb[0].mxu0
    %v259 = vpop.f32.mrb[0].mxu0
    %v260 = vadd.f32 0.0, %v259
    %v261 = vpop.f32.mrb[0].mxu0
    %262 = vdwg.mxu0
    %264 = vset.pattern.permute.xlu0 0
    %265 = vperm.xlu0 %264, %v87
    %v266 = vpop.permute.xlu0 %265
    %269 = vset.pattern.permute.xlu0 0
    %270 = vperm.xlu0 %269, %v88
    %v271 = vpop.permute.xlu0 %270
    %274 = vset.pattern.permute.xlu0 0
    %275 = vperm.xlu0 %274, %v89
    %v276 = vpop.permute.xlu0 %275
    %279 = vset.pattern.permute.xlu0 0
    %280 = vperm.xlu0 %279, %v90
    %v281 = vpop.permute.xlu0 %280
    %v283 = vadd.f32 %v266, %v249
    %v284 = vadd.f32 %v271, %v252
    %v285 = vadd.f32 %v276, %v257
    %v286 = vadd.f32 %v281, %v260
    %v287 = vld [vmem:[%s0 + $0x2] sm:$0x1]
    %v288 = vlaneseq
    %v289 = vshrl.u32 %v288, 7
    %v290 = vsub.s32 0, %v289
    %v291 = vrot.slane %v287, %v290
    %vm292 = vcmp.eq.s32.totalorder %v80, %v291
    %vm293 = vcmp.eq.s32.totalorder %v81, %v291
    %vm294 = vcmp.eq.s32.totalorder %v82, %v291
    %vm295 = vcmp.eq.s32.totalorder %v83, %v291
    %vm296 = vcmp.eq.s32.totalorder %v84, %v291
    %vm297 = vcmp.eq.s32.totalorder %v85, %v291
    %vm298 = vcmp.eq.s32.totalorder %v86, %v291
    %vm299 = vcmp.ge.s32.totalorder %v287, 0
    %v300 = vsel %vm299, 1, 0
    %v301 = vlaneseq
    %v302 = vshrl.u32 %v301, 7
    %v303 = vsub.s32 0, %v302
    %v304 = vrot.slane %v300, %v303
    %vm305 = vcmp.eq.s32.totalorder %v304, 1
    %vm306 = vmand %vm292, %vm305
    %vm307 = vmand %vm293, %vm305
    %vm308 = vmand %vm294, %vm305
    %vm309 = vmand %vm295, %vm305
    %vm310 = vmand %vm296, %vm305
    %vm311 = vmand %vm297, %vm305
    %vm312 = vmand %vm298, %vm305
    %v313 = vsel %vm306, 1, 0
    %v314 = vsel %vm307, 1, 0
    %v315 = vsel %vm308, 1, 0
    %v316 = vsel %vm309, 1, 0
    %v317 = vsel %vm310, 1, 0
    %v318 = vsel %vm311, 1, 0
    %v319 = vsel %vm312, 1, 0
    %v320 = vcvt.s32.f32 %v313
    %v321 = vcvt.s32.f32 %v314
    %v322 = vcvt.s32.f32 %v315
    %v323 = vcvt.s32.f32 %v316
    %v324 = vcvt.s32.f32 %v317
    %v325 = vcvt.s32.f32 %v318
    %v326 = vcvt.s32.f32 %v319
    %v327 = vadd.f32 %v320, 0.0
    %v328 = vadd.f32 %v321, 0.0
    %v329 = vadd.f32 %v322, 0.0
    %v330 = vadd.f32 %v323, 0.0
    %v331 = vadd.f32 %v324, 0.0
    %v332 = vadd.f32 %v325, 0.0
    %v333 = vadd.f32 %v326, 0.0
    %v334 = vld [vmem:[%s0 + $0x3] sm:$0x1]
    %v335 = vlaneseq
    %v336 = vshrl.u32 %v335, 7
    %v337 = vsub.s32 0, %v336
    %v338 = vrot.slane %v334, %v337
    %vm339 = vcmp.eq.s32.totalorder %v80, %v338
    %vm340 = vcmp.eq.s32.totalorder %v81, %v338
    %vm341 = vcmp.eq.s32.totalorder %v82, %v338
    %vm342 = vcmp.eq.s32.totalorder %v83, %v338
    %vm343 = vcmp.eq.s32.totalorder %v84, %v338
    %vm344 = vcmp.eq.s32.totalorder %v85, %v338
    %vm345 = vcmp.eq.s32.totalorder %v86, %v338
    %vm346 = vcmp.ge.s32.totalorder %v334, 0
    %v347 = vsel %vm346, 1, 0
    %v348 = vlaneseq
    %v349 = vshrl.u32 %v348, 7
    %v350 = vsub.s32 0, %v349
    %v351 = vrot.slane %v347, %v350
    %vm352 = vcmp.eq.s32.totalorder %v351, 1
    %vm353 = vmand %vm339, %vm352
    %vm354 = vmand %vm340, %vm352
    %vm355 = vmand %vm341, %vm352
    %vm356 = vmand %vm342, %vm352
    %vm357 = vmand %vm343, %vm352
    %vm358 = vmand %vm344, %vm352
    %vm359 = vmand %vm345, %vm352
    %v360 = vsel %vm353, 1, 0
    %v361 = vsel %vm354, 1, 0
    %v362 = vsel %vm355, 1, 0
    %v363 = vsel %vm356, 1, 0
    %v364 = vsel %vm357, 1, 0
    %v365 = vsel %vm358, 1, 0
    %v366 = vsel %vm359, 1, 0
    %v367 = vcvt.s32.f32 %v360
    %v368 = vcvt.s32.f32 %v361
    %v369 = vcvt.s32.f32 %v362
    %v370 = vcvt.s32.f32 %v363
    %v371 = vcvt.s32.f32 %v364
    %v372 = vcvt.s32.f32 %v365
    %v373 = vcvt.s32.f32 %v366
    %v374 = vadd.f32 %v327, %v367
    %v375 = vadd.f32 %v328, %v368
    %v376 = vadd.f32 %v329, %v369
    %v377 = vadd.f32 %v330, %v370
    %v378 = vadd.f32 %v331, %v371
    %v379 = vadd.f32 %v332, %v372
    %v380 = vadd.f32 %v333, %v373
    %v381 = vld [vmem:[%s0 + $0x4] sm:$0x1]
    %v382 = vlaneseq
    %v383 = vshrl.u32 %v382, 7
    %v384 = vsub.s32 0, %v383
    %v385 = vrot.slane %v381, %v384
    %vm386 = vcmp.eq.s32.totalorder %v80, %v385
    %vm387 = vcmp.eq.s32.totalorder %v81, %v385
    %vm388 = vcmp.eq.s32.totalorder %v82, %v385
    %vm389 = vcmp.eq.s32.totalorder %v83, %v385
    %vm390 = vcmp.eq.s32.totalorder %v84, %v385
    %vm391 = vcmp.eq.s32.totalorder %v85, %v385
    %vm392 = vcmp.eq.s32.totalorder %v86, %v385
    %vm393 = vcmp.ge.s32.totalorder %v381, 0
    %v394 = vsel %vm393, 1, 0
    %v395 = vlaneseq
    %v396 = vshrl.u32 %v395, 7
    %v397 = vsub.s32 0, %v396
    %v398 = vrot.slane %v394, %v397
    %vm399 = vcmp.eq.s32.totalorder %v398, 1
    %vm400 = vmand %vm386, %vm399
    %vm401 = vmand %vm387, %vm399
    %vm402 = vmand %vm388, %vm399
    %vm403 = vmand %vm389, %vm399
    %vm404 = vmand %vm390, %vm399
    %vm405 = vmand %vm391, %vm399
    %vm406 = vmand %vm392, %vm399
    %v407 = vsel %vm400, 1, 0
    %v408 = vsel %vm401, 1, 0
    %v409 = vsel %vm402, 1, 0
    %v410 = vsel %vm403, 1, 0
    %v411 = vsel %vm404, 1, 0
    %v412 = vsel %vm405, 1, 0
    %v413 = vsel %vm406, 1, 0
    %v414 = vcvt.s32.f32 %v407
    %v415 = vcvt.s32.f32 %v408
    %v416 = vcvt.s32.f32 %v409
    %v417 = vcvt.s32.f32 %v410
    %v418 = vcvt.s32.f32 %v411
    %v419 = vcvt.s32.f32 %v412
    %v420 = vcvt.s32.f32 %v413
    %v421 = vadd.f32 %v374, %v414
    %v422 = vadd.f32 %v375, %v415
    %v423 = vadd.f32 %v376, %v416
    %v424 = vadd.f32 %v377, %v417
    %v425 = vadd.f32 %v378, %v418
    %v426 = vadd.f32 %v379, %v419
    %v427 = vadd.f32 %v380, %v420
    %v428 = vpack.c.bf16 %v422, %v421
    %v429 = vpack.c.bf16 %v424, %v423
    %v430 = vpack.c.bf16 %v426, %v425
    %v431 = vpack.c.bf16 %v427, %v427
    %v432 = vld [vmem:[%s3] sm:$0xf]
    %v433 = vld [vmem:[%s3 + $0x4] sm:$0xf]
    %v434 = vld [vmem:[%s3 + $0x8] sm:$0xf]
    %v435 = vld [vmem:[%s3 + $0xc] sm:$0xf]
    %v440 = vunpack.c.l.b16 %v432
    %v441 = vunpack.c.l.b16 %v433
    %v442 = vunpack.c.l.b16 %v434
    %v443 = vunpack.c.l.b16 %v435
    %v444 = vpack.c.b16 %v441, %v440
    %v445 = vpack.c.b16 %v443, %v442
    %v447 = vsel %vm203, %v444, 0
    %v450 = vsel %vm203, %v445, 0
    %v453 = vsel %vm210, %v431, 0
    %455 = vmatprep.subr.bf16.mxu0 0
    %456 = vmatpush1.bf16.msra.mxu0 %v428
    %457 = vmatprep.subr.bf16.mxu0 0
    %458 = vmatpush1.bf16.msra.mxu0 %v429
    %459 = vmatprep.subr.bf16.mxu0 0
    %460 = vmatpush1.bf16.msra.mxu0 %v430
    %461 = vmatprep.subr.bf16.mxu0 0
    %462 = vmatpush1.bf16.msra.mxu0 %v453
    %463 = vmatprep.subr.bf16.mxu0 0
    %464 = vmatpush1.bf16.msra.mxu0 0
    %465 = vmatprep.subr.bf16.mxu0 0
    %466 = vmatpush1.bf16.msra.mxu0 0
    %467 = vmatprep.subr.bf16.mxu0 0
    %468 = vmatpush1.bf16.msra.mxu0 0
    %469 = vmatprep.subr.bf16.mxu0 0
    %470 = vmatpush1.bf16.msra.mxu0 0
    %471 = vmatprep.subr.bf16.mxu0 0
    %472 = vmatpush1.bf16.msra.mxu0 0
    %473 = vmatprep.subr.bf16.mxu0 0
    %474 = vmatpush1.bf16.msra.mxu0 0
    %475 = vmatprep.subr.bf16.mxu0 0
    %476 = vmatpush1.bf16.msra.mxu0 0
    %477 = vmatprep.subr.bf16.mxu0 0
    %478 = vmatpush1.bf16.msra.mxu0 0
    %479 = vmatprep.subr.bf16.mxu0 0
    %480 = vmatpush1.bf16.msra.mxu0 0
    %481 = vmatprep.subr.bf16.mxu0 0
    %482 = vmatpush1.bf16.msra.mxu0 0
    %483 = vmatprep.subr.bf16.mxu0 0
    %484 = vmatpush1.bf16.msra.mxu0 0
    %485 = vmatprep.subr.bf16.mxu0 0
    %486 = vmatpush1.bf16.msra.mxu0 0
    %487 = vmatprep.mubr.bf16.mxu0 0
    %488 = vmatmul.mubr.bf16.gmra.mrb[0].mxu0 %v447
    %v489 = vpop.f32.mrb[0].mxu0
    %v490 = vadd.f32 0.0, %v489
    %v491 = vpop.f32.mrb[0].mxu0
    %v492 = vpop.f32.mrb[0].mxu0
    %v493 = vadd.f32 0.0, %v492
    %v494 = vpop.f32.mrb[0].mxu0
    %495 = vmatprep.mubr.bf16.mxu0 0
    %496 = vmatmul.mubr.bf16.gmra.mrb[0].mxu0 %v450
    %v497 = vpop.f32.mrb[0].mxu0
    %v498 = vadd.f32 0.0, %v497
    %v499 = vpop.f32.mrb[0].mxu0
    %v500 = vpop.f32.mrb[0].mxu0
    %v501 = vadd.f32 0.0, %v500
    %v502 = vpop.f32.mrb[0].mxu0
    %503 = vdwg.mxu0
    %v504 = vadd.f32 %v283, %v490
    %v505 = vadd.f32 %v284, %v493
    %v506 = vadd.f32 %v285, %v498
    %v507 = vadd.f32 %v286, %v501
    %v508 = vld [vmem:[%s0 + $0x5] sm:$0x1]
    %v509 = vlaneseq
    %v510 = vshrl.u32 %v509, 7
    %v511 = vsub.s32 0, %v510
    %v512 = vrot.slane %v508, %v511
    %vm513 = vcmp.eq.s32.totalorder %v80, %v512
    %vm514 = vcmp.eq.s32.totalorder %v81, %v512
    %vm515 = vcmp.eq.s32.totalorder %v82, %v512
    %vm516 = vcmp.eq.s32.totalorder %v83, %v512
    %vm517 = vcmp.eq.s32.totalorder %v84, %v512
    %vm518 = vcmp.eq.s32.totalorder %v85, %v512
    %vm519 = vcmp.eq.s32.totalorder %v86, %v512
    %vm520 = vcmp.ge.s32.totalorder %v508, 0
    %v521 = vsel %vm520, 1, 0
    %v522 = vlaneseq
    %v523 = vshrl.u32 %v522, 7
    %v524 = vsub.s32 0, %v523
    %v525 = vrot.slane %v521, %v524
    %vm526 = vcmp.eq.s32.totalorder %v525, 1
    %vm527 = vmand %vm513, %vm526
    %vm528 = vmand %vm514, %vm526
    %vm529 = vmand %vm515, %vm526
    %vm530 = vmand %vm516, %vm526
    %vm531 = vmand %vm517, %vm526
    %vm532 = vmand %vm518, %vm526
    %vm533 = vmand %vm519, %vm526
    %v534 = vsel %vm527, 1, 0
    %v535 = vsel %vm528, 1, 0
    %v536 = vsel %vm529, 1, 0
    %v537 = vsel %vm530, 1, 0
    %v538 = vsel %vm531, 1, 0
    %v539 = vsel %vm532, 1, 0
    %v540 = vsel %vm533, 1, 0
    %v541 = vcvt.s32.f32 %v534
    %v542 = vcvt.s32.f32 %v535
    %v543 = vcvt.s32.f32 %v536
    %v544 = vcvt.s32.f32 %v537
    %v545 = vcvt.s32.f32 %v538
    %v546 = vcvt.s32.f32 %v539
    %v547 = vcvt.s32.f32 %v540
    %v548 = vadd.f32 %v541, 0.0
    %v549 = vadd.f32 %v542, 0.0
    %v550 = vadd.f32 %v543, 0.0
    %v551 = vadd.f32 %v544, 0.0
    %v552 = vadd.f32 %v545, 0.0
    %v553 = vadd.f32 %v546, 0.0
    %v554 = vadd.f32 %v547, 0.0
    %v555 = vpack.c.bf16 %v549, %v548
    %v556 = vpack.c.bf16 %v551, %v550
    %v557 = vpack.c.bf16 %v553, %v552
    %v558 = vpack.c.bf16 %v554, %v554
    %v559 = vld [vmem:[%s4] sm:$0xf]
    %v560 = vld [vmem:[%s4 + $0x4] sm:$0xf]
    %v561 = vld [vmem:[%s4 + $0x8] sm:$0xf]
    %v562 = vld [vmem:[%s4 + $0xc] sm:$0xf]
    %v567 = vunpack.c.l.b16 %v559
    %v568 = vunpack.c.l.b16 %v560
    %v569 = vunpack.c.l.b16 %v561
    %v570 = vunpack.c.l.b16 %v562
    %v571 = vpack.c.b16 %v568, %v567
    %v572 = vpack.c.b16 %v570, %v569
    %v574 = vsel %vm203, %v571, 0
    %v577 = vsel %vm203, %v572, 0
    %v580 = vsel %vm210, %v558, 0
    %582 = vmatprep.subr.bf16.mxu0 0
    %583 = vmatpush1.bf16.msra.mxu0 %v555
    %584 = vmatprep.subr.bf16.mxu0 0
    %585 = vmatpush1.bf16.msra.mxu0 %v556
    %586 = vmatprep.subr.bf16.mxu0 0
    %587 = vmatpush1.bf16.msra.mxu0 %v557
    %588 = vmatprep.subr.bf16.mxu0 0
    %589 = vmatpush1.bf16.msra.mxu0 %v580
    %590 = vmatprep.subr.bf16.mxu0 0
    %591 = vmatpush1.bf16.msra.mxu0 0
    %592 = vmatprep.subr.bf16.mxu0 0
    %593 = vmatpush1.bf16.msra.mxu0 0
    %594 = vmatprep.subr.bf16.mxu0 0
    %595 = vmatpush1.bf16.msra.mxu0 0
    %596 = vmatprep.subr.bf16.mxu0 0
    %597 = vmatpush1.bf16.msra.mxu0 0
    %598 = vmatprep.subr.bf16.mxu0 0
    %599 = vmatpush1.bf16.msra.mxu0 0
    %600 = vmatprep.subr.bf16.mxu0 0
    %601 = vmatpush1.bf16.msra.mxu0 0
    %602 = vmatprep.subr.bf16.mxu0 0
    %603 = vmatpush1.bf16.msra.mxu0 0
    %604 = vmatprep.subr.bf16.mxu0 0
    %605 = vmatpush1.bf16.msra.mxu0 0
    %606 = vmatprep.subr.bf16.mxu0 0
    %607 = vmatpush1.bf16.msra.mxu0 0
    %608 = vmatprep.subr.bf16.mxu0 0
    %609 = vmatpush1.bf16.msra.mxu0 0
    %610 = vmatprep.subr.bf16.mxu0 0
    %611 = vmatpush1.bf16.msra.mxu0 0
    %612 = vmatprep.subr.bf16.mxu0 0
    %613 = vmatpush1.bf16.msra.mxu0 0
    %614 = vmatprep.mubr.bf16.mxu0 0
    %615 = vmatmul.mubr.bf16.gmra.mrb[0].mxu0 %v574
    %v616 = vpop.f32.mrb[0].mxu0
    %v617 = vadd.f32 0.0, %v616
    %v618 = vpop.f32.mrb[0].mxu0
    %v619 = vpop.f32.mrb[0].mxu0
    %v620 = vadd.f32 0.0, %v619
    %v621 = vpop.f32.mrb[0].mxu0
    %622 = vmatprep.mubr.bf16.mxu0 0
    %623 = vmatmul.mubr.bf16.gmra.mrb[0].mxu0 %v577
    %v624 = vpop.f32.mrb[0].mxu0
    %v625 = vadd.f32 0.0, %v624
    %v626 = vpop.f32.mrb[0].mxu0
    %v627 = vpop.f32.mrb[0].mxu0
    %v628 = vadd.f32 0.0, %v627
    %v629 = vpop.f32.mrb[0].mxu0
    %630 = vdwg.mxu0
    %v631 = vadd.f32 %v504, %v617
    %v632 = vadd.f32 %v505, %v620
    %v633 = vadd.f32 %v506, %v625
    %v634 = vadd.f32 %v507, %v628
    %v635 = vld [vmem:[%s0 + $0x6] sm:$0x1]
    %v636 = vlaneseq
    %v637 = vshrl.u32 %v636, 7
    %v638 = vsub.s32 0, %v637
    %v639 = vrot.slane %v635, %v638
    %vm640 = vcmp.eq.s32.totalorder %v80, %v639
    %vm641 = vcmp.eq.s32.totalorder %v81, %v639
    %vm642 = vcmp.eq.s32.totalorder %v82, %v639
    %vm643 = vcmp.eq.s32.totalorder %v83, %v639
    %vm644 = vcmp.eq.s32.totalorder %v84, %v639
    %vm645 = vcmp.eq.s32.totalorder %v85, %v639
    %vm646 = vcmp.eq.s32.totalorder %v86, %v639
    %vm647 = vcmp.ge.s32.totalorder %v635, 0
    %v648 = vsel %vm647, 1, 0
    %v649 = vlaneseq
    %v650 = vshrl.u32 %v649, 7
    %v651 = vsub.s32 0, %v650
    %v652 = vrot.slane %v648, %v651
    %vm653 = vcmp.eq.s32.totalorder %v652, 1
    %vm654 = vmand %vm640, %vm653
    %vm655 = vmand %vm641, %vm653
    %vm656 = vmand %vm642, %vm653
    %vm657 = vmand %vm643, %vm653
    %vm658 = vmand %vm644, %vm653
    %vm659 = vmand %vm645, %vm653
    %vm660 = vmand %vm646, %vm653
    %v661 = vsel %vm654, 1, 0
    %v662 = vsel %vm655, 1, 0
    %v663 = vsel %vm656, 1, 0
    %v664 = vsel %vm657, 1, 0
    %v665 = vsel %vm658, 1, 0
    %v666 = vsel %vm659, 1, 0
    %v667 = vsel %vm660, 1, 0
    %v668 = vcvt.s32.f32 %v661
    %v669 = vcvt.s32.f32 %v662
    %v670 = vcvt.s32.f32 %v663
    %v671 = vcvt.s32.f32 %v664
    %v672 = vcvt.s32.f32 %v665
    %v673 = vcvt.s32.f32 %v666
    %v674 = vcvt.s32.f32 %v667
    %v675 = vadd.f32 %v668, 0.0
    %v676 = vadd.f32 %v669, 0.0
    %v677 = vadd.f32 %v670, 0.0
    %v678 = vadd.f32 %v671, 0.0
    %v679 = vadd.f32 %v672, 0.0
    %v680 = vadd.f32 %v673, 0.0
    %v681 = vadd.f32 %v674, 0.0
    %v682 = vpack.c.bf16 %v676, %v675
    %v683 = vpack.c.bf16 %v678, %v677
    %v684 = vpack.c.bf16 %v680, %v679
    %v685 = vpack.c.bf16 %v681, %v681
    %v686 = vld [vmem:[%s5] sm:$0xf]
    %v687 = vld [vmem:[%s5 + $0x4] sm:$0xf]
    %v688 = vld [vmem:[%s5 + $0x8] sm:$0xf]
    %v689 = vld [vmem:[%s5 + $0xc] sm:$0xf]
    %v694 = vunpack.c.l.b16 %v686
    %v695 = vunpack.c.l.b16 %v687
    %v696 = vunpack.c.l.b16 %v688
    %v697 = vunpack.c.l.b16 %v689
    %v698 = vpack.c.b16 %v695, %v694
    %v699 = vpack.c.b16 %v697, %v696
    %v701 = vsel %vm203, %v698, 0
    %v704 = vsel %vm203, %v699, 0
    %v707 = vsel %vm210, %v685, 0
    %709 = vmatprep.subr.bf16.mxu0 0
    %710 = vmatpush1.bf16.msra.mxu0 %v682
    %711 = vmatprep.subr.bf16.mxu0 0
    %712 = vmatpush1.bf16.msra.mxu0 %v683
    %713 = vmatprep.subr.bf16.mxu0 0
    %714 = vmatpush1.bf16.msra.mxu0 %v684
    %715 = vmatprep.subr.bf16.mxu0 0
    %716 = vmatpush1.bf16.msra.mxu0 %v707
    %717 = vmatprep.subr.bf16.mxu0 0
    %718 = vmatpush1.bf16.msra.mxu0 0
    %719 = vmatprep.subr.bf16.mxu0 0
    %720 = vmatpush1.bf16.msra.mxu0 0
    %721 = vmatprep.subr.bf16.mxu0 0
    %722 = vmatpush1.bf16.msra.mxu0 0
    %723 = vmatprep.subr.bf16.mxu0 0
    %724 = vmatpush1.bf16.msra.mxu0 0
    %725 = vmatprep.subr.bf16.mxu0 0
    %726 = vmatpush1.bf16.msra.mxu0 0
    %727 = vmatprep.subr.bf16.mxu0 0
    %728 = vmatpush1.bf16.msra.mxu0 0
    %729 = vmatprep.subr.bf16.mxu0 0
    %730 = vmatpush1.bf16.msra.mxu0 0
    %731 = vmatprep.subr.bf16.mxu0 0
    %732 = vmatpush1.bf16.msra.mxu0 0
    %733 = vmatprep.subr.bf16.mxu0 0
    %734 = vmatpush1.bf16.msra.mxu0 0
    %735 = vmatprep.subr.bf16.mxu0 0
    %736 = vmatpush1.bf16.msra.mxu0 0
    %737 = vmatprep.subr.bf16.mxu0 0
    %738 = vmatpush1.bf16.msra.mxu0 0
    %739 = vmatprep.subr.bf16.mxu0 0
    %740 = vmatpush1.bf16.msra.mxu0 0
    %741 = vmatprep.mubr.bf16.mxu0 0
    %742 = vmatmul.mubr.bf16.gmra.mrb[0].mxu0 %v701
    %v743 = vpop.f32.mrb[0].mxu0
    %v744 = vadd.f32 0.0, %v743
    %v745 = vpop.f32.mrb[0].mxu0
    %v746 = vpop.f32.mrb[0].mxu0
    %v747 = vadd.f32 0.0, %v746
    %v748 = vpop.f32.mrb[0].mxu0
    %749 = vmatprep.mubr.bf16.mxu0 0
    %750 = vmatmul.mubr.bf16.gmra.mrb[0].mxu0 %v704
    %v751 = vpop.f32.mrb[0].mxu0
    %v752 = vadd.f32 0.0, %v751
    %v753 = vpop.f32.mrb[0].mxu0
    %v754 = vpop.f32.mrb[0].mxu0
    %v755 = vadd.f32 0.0, %v754
    %v756 = vpop.f32.mrb[0].mxu0
    %757 = vdwg.mxu0
    %v758 = vadd.f32 %v631, %v744
    %v759 = vadd.f32 %v632, %v747
    %v760 = vadd.f32 %v633, %v752
    %v761 = vadd.f32 %v634, %v755
    %v762 = vmax.f32 %v758, 0.0
    %v763 = vmax.f32 %v759, 0.0
    %v764 = vmax.f32 %v760, 0.0
    %v765 = vmax.f32 %v761, 0.0
    %v766 = vld [vmem:[%s7] sm:$0xf]
    %v767 = vld [vmem:[%s7 + $0x4] sm:$0xf]
    %v768 = vld [vmem:[%s7 + $0x8] sm:$0xf]
    %v769 = vld [vmem:[%s7 + $0xc] sm:$0xf]
    %v770 = vpack.c.bf16 %v763, %v762
    %v771 = vpack.c.bf16 %v765, %v764
    %v772 = vld [vmem:[%s8] sm:$0xff]
    %v773 = vld [vmem:[%s8 + $0x8] sm:$0xff]
    %v774 = vld [vmem:[%s8 + $0x10] sm:$0xff]
    %v775 = vld [vmem:[%s8 + $0x18] sm:$0xff]
    %777 = vset.pattern.permute.xlu0 0
    %778 = vperm.xlu0 %777, %v772
    %v779 = vpop.permute.xlu0 %778
    %782 = vset.pattern.permute.xlu0 0
    %783 = vperm.xlu0 %782, %v773
    %v784 = vpop.permute.xlu0 %783
    %787 = vset.pattern.permute.xlu0 0
    %788 = vperm.xlu0 %787, %v774
    %v789 = vpop.permute.xlu0 %788
    %792 = vset.pattern.permute.xlu0 0
    %793 = vperm.xlu0 %792, %v775
    %v794 = vpop.permute.xlu0 %793
    %v800 = vunpack.c.l.b16 %v766
    %v801 = vunpack.c.l.b16 %v767
    %v802 = vunpack.c.l.b16 %v768
    %v803 = vunpack.c.l.b16 %v769
    %v804 = vpack.c.b16 %v801, %v800
    %v805 = vpack.c.b16 %v803, %v802
    %vm806 = vcmask 261120
    %v808 = vsel %vm806, %v804, 0
    %v811 = vsel %vm806, %v805, 0
    %813 = vmatprep.subr.bf16.mxu0 0
    %814 = vmatpush1.bf16.msra.mxu0 %v770
    %815 = vmatprep.subr.bf16.mxu0 0
    %816 = vmatpush1.bf16.msra.mxu0 %v771
    %817 = vmatprep.subr.bf16.mxu0 0
    %818 = vmatpush1.bf16.msra.mxu0 0
    %819 = vmatprep.subr.bf16.mxu0 0
    %820 = vmatpush1.bf16.msra.mxu0 0
    %821 = vmatprep.subr.bf16.mxu0 0
    %822 = vmatpush1.bf16.msra.mxu0 0
    %823 = vmatprep.subr.bf16.mxu0 0
    %824 = vmatpush1.bf16.msra.mxu0 0
    %825 = vmatprep.subr.bf16.mxu0 0
    %826 = vmatpush1.bf16.msra.mxu0 0
    %827 = vmatprep.subr.bf16.mxu0 0
    %828 = vmatpush1.bf16.msra.mxu0 0
    %829 = vmatprep.subr.bf16.mxu0 0
    %830 = vmatpush1.bf16.msra.mxu0 0
    %831 = vmatprep.subr.bf16.mxu0 0
    %832 = vmatpush1.bf16.msra.mxu0 0
    %833 = vmatprep.subr.bf16.mxu0 0
    %834 = vmatpush1.bf16.msra.mxu0 0
    %835 = vmatprep.subr.bf16.mxu0 0
    %836 = vmatpush1.bf16.msra.mxu0 0
    %837 = vmatprep.subr.bf16.mxu0 0
    %838 = vmatpush1.bf16.msra.mxu0 0
    %839 = vmatprep.subr.bf16.mxu0 0
    %840 = vmatpush1.bf16.msra.mxu0 0
    %841 = vmatprep.subr.bf16.mxu0 0
    %842 = vmatpush1.bf16.msra.mxu0 0
    %843 = vmatprep.subr.bf16.mxu0 0
    %844 = vmatpush1.bf16.msra.mxu0 0
    %845 = vmatprep.mubr.bf16.mxu0 0
    %846 = vmatmul.mubr.bf16.gmra.mrb[0].mxu0 %v808
    %v847 = vpop.f32.mrb[0].mxu0
    %v848 = vadd.f32 %v779, %v847
    %v849 = vpop.f32.mrb[0].mxu0
    %v850 = vpop.f32.mrb[0].mxu0
    %v851 = vadd.f32 %v784, %v850
    %v852 = vpop.f32.mrb[0].mxu0
    %853 = vmatprep.mubr.bf16.mxu0 0
    %854 = vmatmul.mubr.bf16.gmra.mrb[0].mxu0 %v811
    %v855 = vpop.f32.mrb[0].mxu0
    %v856 = vadd.f32 %v789, %v855
    %v857 = vpop.f32.mrb[0].mxu0
    %v858 = vpop.f32.mrb[0].mxu0
    %v859 = vadd.f32 %v794, %v858
    %v860 = vpop.f32.mrb[0].mxu0
    %861 = vdwg.mxu0
    %v862 = vmax.f32 %v848, 0.0
    %v863 = vmax.f32 %v851, 0.0
    %v864 = vmax.f32 %v856, 0.0
    %v865 = vmax.f32 %v859, 0.0
    %v866 = vld [vmem:[%s9] sm:$0xf]
    %v867 = vld [vmem:[%s9 + $0x4] sm:$0xf]
    %v868 = vld [vmem:[%s9 + $0x8] sm:$0xf]
    %v869 = vld [vmem:[%s9 + $0xc] sm:$0xf]
    %v870 = vpack.c.bf16 %v863, %v862
    %v871 = vpack.c.bf16 %v865, %v864
    %v872 = vld [vmem:[%s10] sm:$0xff]
    %v873 = vld [vmem:[%s10 + $0x8] sm:$0xff]
    %v874 = vld [vmem:[%s10 + $0x10] sm:$0xff]
    %v875 = vld [vmem:[%s10 + $0x18] sm:$0xff]
    %877 = vset.pattern.permute.xlu0 0
    %878 = vperm.xlu0 %877, %v872
    %v879 = vpop.permute.xlu0 %878
    %882 = vset.pattern.permute.xlu0 0
    %883 = vperm.xlu0 %882, %v873
    %v884 = vpop.permute.xlu0 %883
    %887 = vset.pattern.permute.xlu0 0
    %888 = vperm.xlu0 %887, %v874
    %v889 = vpop.permute.xlu0 %888
    %892 = vset.pattern.permute.xlu0 0
    %893 = vperm.xlu0 %892, %v875
    %v894 = vpop.permute.xlu0 %893
    %v900 = vunpack.c.l.b16 %v866
    %v901 = vunpack.c.l.b16 %v867
    %v902 = vunpack.c.l.b16 %v868
    %v903 = vunpack.c.l.b16 %v869
    %v904 = vpack.c.b16 %v901, %v900
    %v905 = vpack.c.b16 %v903, %v902
    %v907 = vsel %vm806, %v904, 0
    %v910 = vsel %vm806, %v905, 0
    %912 = vmatprep.subr.bf16.mxu0 0
    %913 = vmatpush1.bf16.msra.mxu0 %v870
    %914 = vmatprep.subr.bf16.mxu0 0
    %915 = vmatpush1.bf16.msra.mxu0 %v871
    %916 = vmatprep.subr.bf16.mxu0 0
    %917 = vmatpush1.bf16.msra.mxu0 0
    %918 = vmatprep.subr.bf16.mxu0 0
    %919 = vmatpush1.bf16.msra.mxu0 0
    %920 = vmatprep.subr.bf16.mxu0 0
    %921 = vmatpush1.bf16.msra.mxu0 0
    %922 = vmatprep.subr.bf16.mxu0 0
    %923 = vmatpush1.bf16.msra.mxu0 0
    %924 = vmatprep.subr.bf16.mxu0 0
    %925 = vmatpush1.bf16.msra.mxu0 0
    %926 = vmatprep.subr.bf16.mxu0 0
    %927 = vmatpush1.bf16.msra.mxu0 0
    %928 = vmatprep.subr.bf16.mxu0 0
    %929 = vmatpush1.bf16.msra.mxu0 0
    %930 = vmatprep.subr.bf16.mxu0 0
    %931 = vmatpush1.bf16.msra.mxu0 0
    %932 = vmatprep.subr.bf16.mxu0 0
    %933 = vmatpush1.bf16.msra.mxu0 0
    %934 = vmatprep.subr.bf16.mxu0 0
    %935 = vmatpush1.bf16.msra.mxu0 0
    %936 = vmatprep.subr.bf16.mxu0 0
    %937 = vmatpush1.bf16.msra.mxu0 0
    %938 = vmatprep.subr.bf16.mxu0 0
    %939 = vmatpush1.bf16.msra.mxu0 0
    %940 = vmatprep.subr.bf16.mxu0 0
    %941 = vmatpush1.bf16.msra.mxu0 0
    %942 = vmatprep.subr.bf16.mxu0 0
    %943 = vmatpush1.bf16.msra.mxu0 0
    %944 = vmatprep.mubr.bf16.mxu0 0
    %945 = vmatmul.mubr.bf16.gmra.mrb[0].mxu0 %v907
    %v946 = vpop.f32.mrb[0].mxu0
    %v947 = vadd.f32 %v879, %v946
    %v948 = vpop.f32.mrb[0].mxu0
    %v949 = vpop.f32.mrb[0].mxu0
    %v950 = vadd.f32 %v884, %v949
    %v951 = vpop.f32.mrb[0].mxu0
    %952 = vmatprep.mubr.bf16.mxu0 0
    %953 = vmatmul.mubr.bf16.gmra.mrb[0].mxu0 %v910
    %v954 = vpop.f32.mrb[0].mxu0
    %v955 = vadd.f32 %v889, %v954
    %v956 = vpop.f32.mrb[0].mxu0
    %v957 = vpop.f32.mrb[0].mxu0
    %v958 = vadd.f32 %v894, %v957
    %v959 = vpop.f32.mrb[0].mxu0
    %960 = vdwg.mxu0
    %v961 = vmax.f32 %v947, 0.0
    %v962 = vmax.f32 %v950, 0.0
    %v963 = vmax.f32 %v955, 0.0
    %v964 = vmax.f32 %v958, 0.0
    %v965 = vld [vmem:[%s1] sm:$0xf]
    %v966 = vld [vmem:[%s1 + $0x4] sm:$0xf]
    %v967 = vld [vmem:[%s11] sm:$0xf]
    %v968 = vld [vmem:[%s11 + $0x4] sm:$0xf]
    %v969 = vld [vmem:[%s11 + $0x8] sm:$0xf]
    %v970 = vld [vmem:[%s11 + $0xc] sm:$0xf]
    %v971 = vld [vmem:[%s12] sm:$0xff]
    %v972 = vld [vmem:[%s12 + $0x8] sm:$0xff]
    %v973 = vld [vmem:[%s12 + $0x10] sm:$0xff]
    %v974 = vld [vmem:[%s12 + $0x18] sm:$0xff]
    %976 = vset.pattern.permute.xlu0 0
    %977 = vperm.xlu0 %976, %v971
    %v978 = vpop.permute.xlu0 %977
    %981 = vset.pattern.permute.xlu0 0
    %982 = vperm.xlu0 %981, %v972
    %v983 = vpop.permute.xlu0 %982
    %986 = vset.pattern.permute.xlu0 0
    %987 = vperm.xlu0 %986, %v973
    %v988 = vpop.permute.xlu0 %987
    %991 = vset.pattern.permute.xlu0 0
    %992 = vperm.xlu0 %991, %v974
    %v993 = vpop.permute.xlu0 %992
    %v999 = vunpack.c.l.b16 %v967
    %v1000 = vunpack.c.l.b16 %v968
    %v1001 = vunpack.c.l.b16 %v969
    %v1002 = vunpack.c.l.b16 %v970
    %v1003 = vpack.c.b16 %v1000, %v999
    %v1004 = vpack.c.b16 %v1002, %v1001
    %v1007 = vunpack.c.l.b16 %v965
    %v1008 = vunpack.c.l.b16 %v966
    %v1009 = vpack.c.b16 %v1008, %v1007
    %vm1011 = vcmask 130048
    %v1013 = vsel %vm1011, %v1003, 0
    %v1016 = vsel %vm1011, %v1004, 0
    %1018 = vmatprep.subr.bf16.mxu0 0
    %1019 = vmatpush1.bf16.msra.mxu0 %v1009
    %1020 = vmatprep.subr.bf16.mxu0 0
    %1021 = vmatpush1.bf16.msra.mxu0 0
    %1022 = vmatprep.subr.bf16.mxu0 0
    %1023 = vmatpush1.bf16.msra.mxu0 0
    %1024 = vmatprep.subr.bf16.mxu0 0
    %1025 = vmatpush1.bf16.msra.mxu0 0
    %1026 = vmatprep.subr.bf16.mxu0 0
    %1027 = vmatpush1.bf16.msra.mxu0 0
    %1028 = vmatprep.subr.bf16.mxu0 0
    %1029 = vmatpush1.bf16.msra.mxu0 0
    %1030 = vmatprep.subr.bf16.mxu0 0
    %1031 = vmatpush1.bf16.msra.mxu0 0
    %1032 = vmatprep.subr.bf16.mxu0 0
    %1033 = vmatpush1.bf16.msra.mxu0 0
    %1034 = vmatprep.subr.bf16.mxu0 0
    %1035 = vmatpush1.bf16.msra.mxu0 0
    %1036 = vmatprep.subr.bf16.mxu0 0
    %1037 = vmatpush1.bf16.msra.mxu0 0
    %1038 = vmatprep.subr.bf16.mxu0 0
    %1039 = vmatpush1.bf16.msra.mxu0 0
    %1040 = vmatprep.subr.bf16.mxu0 0
    %1041 = vmatpush1.bf16.msra.mxu0 0
    %1042 = vmatprep.subr.bf16.mxu0 0
    %1043 = vmatpush1.bf16.msra.mxu0 0
    %1044 = vmatprep.subr.bf16.mxu0 0
    %1045 = vmatpush1.bf16.msra.mxu0 0
    %1046 = vmatprep.subr.bf16.mxu0 0
    %1047 = vmatpush1.bf16.msra.mxu0 0
    %1048 = vmatprep.subr.bf16.mxu0 0
    %1049 = vmatpush1.bf16.msra.mxu0 0
    %1050 = vmatprep.mubr.bf16.mxu0 0
    %1051 = vmatmul.mubr.bf16.gmra.mrb[0].mxu0 %v1013
    %v1052 = vpop.f32.mrb[0].mxu0
    %v1053 = vadd.f32 %v978, %v1052
    %v1054 = vpop.f32.mrb[0].mxu0
    %v1055 = vpop.f32.mrb[0].mxu0
    %v1056 = vadd.f32 %v983, %v1055
    %v1057 = vpop.f32.mrb[0].mxu0
    %1058 = vmatprep.mubr.bf16.mxu0 0
    %1059 = vmatmul.mubr.bf16.gmra.mrb[0].mxu0 %v1016
    %v1060 = vpop.f32.mrb[0].mxu0
    %v1061 = vadd.f32 %v988, %v1060
    %v1062 = vpop.f32.mrb[0].mxu0
    %v1063 = vpop.f32.mrb[0].mxu0
    %v1064 = vadd.f32 %v993, %v1063
    %v1065 = vpop.f32.mrb[0].mxu0
    %1066 = vdwg.mxu0
    %v1067 = vmax.f32 %v1053, 0.0
    %v1068 = vmax.f32 %v1056, 0.0
    %v1069 = vmax.f32 %v1061, 0.0
    %v1070 = vmax.f32 %v1064, 0.0
    %v1071 = vld [vmem:[%s13] sm:$0xf]
    %v1072 = vld [vmem:[%s13 + $0x4] sm:$0xf]
    %v1073 = vld [vmem:[%s13 + $0x8] sm:$0xf]
    %v1074 = vld [vmem:[%s13 + $0xc] sm:$0xf]
    %v1075 = vpack.c.bf16 %v1068, %v1067
    %v1076 = vpack.c.bf16 %v1070, %v1069
    %v1077 = vld [vmem:[%s14] sm:$0xff]
    %v1078 = vld [vmem:[%s14 + $0x8] sm:$0xff]
    %v1079 = vld [vmem:[%s14 + $0x10] sm:$0xff]
    %v1080 = vld [vmem:[%s14 + $0x18] sm:$0xff]
    %1082 = vset.pattern.permute.xlu0 0
    %1083 = vperm.xlu0 %1082, %v1077
    %v1084 = vpop.permute.xlu0 %1083
    %1087 = vset.pattern.permute.xlu0 0
    %1088 = vperm.xlu0 %1087, %v1078
    %v1089 = vpop.permute.xlu0 %1088
    %1092 = vset.pattern.permute.xlu0 0
    %1093 = vperm.xlu0 %1092, %v1079
    %v1094 = vpop.permute.xlu0 %1093
    %1097 = vset.pattern.permute.xlu0 0
    %1098 = vperm.xlu0 %1097, %v1080
    %v1099 = vpop.permute.xlu0 %1098
    %v1105 = vunpack.c.l.b16 %v1071
    %v1106 = vunpack.c.l.b16 %v1072
    %v1107 = vunpack.c.l.b16 %v1073
    %v1108 = vunpack.c.l.b16 %v1074
    %v1109 = vpack.c.b16 %v1106, %v1105
    %v1110 = vpack.c.b16 %v1108, %v1107
    %v1112 = vsel %vm806, %v1109, 0
    %v1115 = vsel %vm806, %v1110, 0
    %1117 = vmatprep.subr.bf16.mxu0 0
    %1118 = vmatpush1.bf16.msra.mxu0 %v1075
    %1119 = vmatprep.subr.bf16.mxu0 0
    %1120 = vmatpush1.bf16.msra.mxu0 %v1076
    %1121 = vmatprep.subr.bf16.mxu0 0
    %1122 = vmatpush1.bf16.msra.mxu0 0
    %1123 = vmatprep.subr.bf16.mxu0 0
    %1124 = vmatpush1.bf16.msra.mxu0 0
    %1125 = vmatprep.subr.bf16.mxu0 0
    %1126 = vmatpush1.bf16.msra.mxu0 0
    %1127 = vmatprep.subr.bf16.mxu0 0
    %1128 = vmatpush1.bf16.msra.mxu0 0
    %1129 = vmatprep.subr.bf16.mxu0 0
    %1130 = vmatpush1.bf16.msra.mxu0 0
    %1131 = vmatprep.subr.bf16.mxu0 0
    %1132 = vmatpush1.bf16.msra.mxu0 0
    %1133 = vmatprep.subr.bf16.mxu0 0
    %1134 = vmatpush1.bf16.msra.mxu0 0
    %1135 = vmatprep.subr.bf16.mxu0 0
    %1136 = vmatpush1.bf16.msra.mxu0 0
    %1137 = vmatprep.subr.bf16.mxu0 0
    %1138 = vmatpush1.bf16.msra.mxu0 0
    %1139 = vmatprep.subr.bf16.mxu0 0
    %1140 = vmatpush1.bf16.msra.mxu0 0
    %1141 = vmatprep.subr.bf16.mxu0 0
    %1142 = vmatpush1.bf16.msra.mxu0 0
    %1143 = vmatprep.subr.bf16.mxu0 0
    %1144 = vmatpush1.bf16.msra.mxu0 0
    %1145 = vmatprep.subr.bf16.mxu0 0
    %1146 = vmatpush1.bf16.msra.mxu0 0
    %1147 = vmatprep.subr.bf16.mxu0 0
    %1148 = vmatpush1.bf16.msra.mxu0 0
    %1149 = vmatprep.mubr.bf16.mxu0 0
    %1150 = vmatmul.mubr.bf16.gmra.mrb[0].mxu0 %v1112
    %v1151 = vpop.f32.mrb[0].mxu0
    %v1152 = vadd.f32 %v1084, %v1151
    %v1153 = vpop.f32.mrb[0].mxu0
    %v1154 = vpop.f32.mrb[0].mxu0
    %v1155 = vadd.f32 %v1089, %v1154
    %v1156 = vpop.f32.mrb[0].mxu0
    %1157 = vmatprep.mubr.bf16.mxu0 0
    %1158 = vmatmul.mubr.bf16.gmra.mrb[0].mxu0 %v1115
    %v1159 = vpop.f32.mrb[0].mxu0
    %v1160 = vadd.f32 %v1094, %v1159
    %v1161 = vpop.f32.mrb[0].mxu0
    %v1162 = vpop.f32.mrb[0].mxu0
    %v1163 = vadd.f32 %v1099, %v1162
    %v1164 = vpop.f32.mrb[0].mxu0
    %1165 = vdwg.mxu0
    %v1166 = vadd.f32 %v1152, %v1067
    %v1167 = vadd.f32 %v1155, %v1068
    %v1168 = vadd.f32 %v1160, %v1069
    %v1169 = vadd.f32 %v1163, %v1070
    %v1170 = vmax.f32 %v1166, 0.0
    %v1171 = vmax.f32 %v1167, 0.0
    %v1172 = vmax.f32 %v1168, 0.0
    %v1173 = vmax.f32 %v1169, 0.0
    %v1174 = vld [vmem:[%s15] sm:$0xf]
    %v1175 = vld [vmem:[%s15 + $0x4] sm:$0xf]
    %v1176 = vld [vmem:[%s15 + $0x8] sm:$0xf]
    %v1177 = vld [vmem:[%s15 + $0xc] sm:$0xf]
    %v1178 = vpack.c.bf16 %v962, %v961
    %v1179 = vpack.c.bf16 %v964, %v963
    %v1180 = vld [vmem:[%s16] sm:$0xf]
    %v1181 = vld [vmem:[%s16 + $0x4] sm:$0xf]
    %v1182 = vld [vmem:[%s16 + $0x8] sm:$0xf]
    %v1183 = vld [vmem:[%s16 + $0xc] sm:$0xf]
    %v1184 = vpack.c.bf16 %v1171, %v1170
    %v1185 = vpack.c.bf16 %v1173, %v1172
    %v1190 = vunpack.c.l.b16 %v1180
    %v1191 = vunpack.c.l.b16 %v1181
    %v1192 = vunpack.c.l.b16 %v1182
    %v1193 = vunpack.c.l.b16 %v1183
    %v1194 = vpack.c.b16 %v1191, %v1190
    %v1195 = vpack.c.b16 %v1193, %v1192
    %v1197 = vsel %vm806, %v1194, 0
    %v1200 = vsel %vm806, %v1195, 0
    %1202 = vmatprep.subr.bf16.mxu0 0
    %1203 = vmatpush1.bf16.msra.mxu0 %v1184
    %1204 = vmatprep.subr.bf16.mxu0 0
    %1205 = vmatpush1.bf16.msra.mxu0 %v1185
    %1206 = vmatprep.subr.bf16.mxu0 0
    %1207 = vmatpush1.bf16.msra.mxu0 0
    %1208 = vmatprep.subr.bf16.mxu0 0
    %1209 = vmatpush1.bf16.msra.mxu0 0
    %1210 = vmatprep.subr.bf16.mxu0 0
    %1211 = vmatpush1.bf16.msra.mxu0 0
    %1212 = vmatprep.subr.bf16.mxu0 0
    %1213 = vmatpush1.bf16.msra.mxu0 0
    %1214 = vmatprep.subr.bf16.mxu0 0
    %1215 = vmatpush1.bf16.msra.mxu0 0
    %1216 = vmatprep.subr.bf16.mxu0 0
    %1217 = vmatpush1.bf16.msra.mxu0 0
    %1218 = vmatprep.subr.bf16.mxu0 0
    %1219 = vmatpush1.bf16.msra.mxu0 0
    %1220 = vmatprep.subr.bf16.mxu0 0
    %1221 = vmatpush1.bf16.msra.mxu0 0
    %1222 = vmatprep.subr.bf16.mxu0 0
    %1223 = vmatpush1.bf16.msra.mxu0 0
    %1224 = vmatprep.subr.bf16.mxu0 0
    %1225 = vmatpush1.bf16.msra.mxu0 0
    %1226 = vmatprep.subr.bf16.mxu0 0
    %1227 = vmatpush1.bf16.msra.mxu0 0
    %1228 = vmatprep.subr.bf16.mxu0 0
    %1229 = vmatpush1.bf16.msra.mxu0 0
    %1230 = vmatprep.subr.bf16.mxu0 0
    %1231 = vmatpush1.bf16.msra.mxu0 0
    %1232 = vmatprep.subr.bf16.mxu0 0
    %1233 = vmatpush1.bf16.msra.mxu0 0
    %1234 = vmatprep.mubr.bf16.mxu0 0
    %1235 = vmatmul.mubr.bf16.gmra.mrb[0].mxu0 %v1197
    %v1236 = vpop.f32.mrb[0].mxu0
    %v1237 = vadd.f32 0.0, %v1236
    %v1238 = vpop.f32.mrb[0].mxu0
    %v1239 = vpop.f32.mrb[0].mxu0
    %v1240 = vadd.f32 0.0, %v1239
    %v1241 = vpop.f32.mrb[0].mxu0
    %1242 = vmatprep.mubr.bf16.mxu0 0
    %1243 = vmatmul.mubr.bf16.gmra.mrb[0].mxu0 %v1200
    %v1244 = vpop.f32.mrb[0].mxu0
    %v1245 = vadd.f32 0.0, %v1244
    %v1246 = vpop.f32.mrb[0].mxu0
    %v1247 = vpop.f32.mrb[0].mxu0
    %v1248 = vadd.f32 0.0, %v1247
    %v1249 = vpop.f32.mrb[0].mxu0
    %1250 = vdwg.mxu0
    %v1255 = vunpack.c.l.b16 %v1174
    %v1256 = vunpack.c.l.b16 %v1175
    %v1257 = vunpack.c.l.b16 %v1176
    %v1258 = vunpack.c.l.b16 %v1177
    %v1259 = vpack.c.b16 %v1256, %v1255
    %v1260 = vpack.c.b16 %v1258, %v1257
    %v1262 = vsel %vm806, %v1259, 0
    %v1265 = vsel %vm806, %v1260, 0
    %1267 = vmatprep.subr.bf16.mxu0 0
    %1268 = vmatpush1.bf16.msra.mxu0 %v1178
    %1269 = vmatprep.subr.bf16.mxu0 0
    %1270 = vmatpush1.bf16.msra.mxu0 %v1179
    %1271 = vmatprep.subr.bf16.mxu0 0
    %1272 = vmatpush1.bf16.msra.mxu0 0
    %1273 = vmatprep.subr.bf16.mxu0 0
    %1274 = vmatpush1.bf16.msra.mxu0 0
    %1275 = vmatprep.subr.bf16.mxu0 0
    %1276 = vmatpush1.bf16.msra.mxu0 0
    %1277 = vmatprep.subr.bf16.mxu0 0
    %1278 = vmatpush1.bf16.msra.mxu0 0
    %1279 = vmatprep.subr.bf16.mxu0 0
    %1280 = vmatpush1.bf16.msra.mxu0 0
    %1281 = vmatprep.subr.bf16.mxu0 0
    %1282 = vmatpush1.bf16.msra.mxu0 0
    %1283 = vmatprep.subr.bf16.mxu0 0
    %1284 = vmatpush1.bf16.msra.mxu0 0
    %1285 = vmatprep.subr.bf16.mxu0 0
    %1286 = vmatpush1.bf16.msra.mxu0 0
    %1287 = vmatprep.subr.bf16.mxu0 0
    %1288 = vmatpush1.bf16.msra.mxu0 0
    %1289 = vmatprep.subr.bf16.mxu0 0
    %1290 = vmatpush1.bf16.msra.mxu0 0
    %1291 = vmatprep.subr.bf16.mxu0 0
    %1292 = vmatpush1.bf16.msra.mxu0 0
    %1293 = vmatprep.subr.bf16.mxu0 0
    %1294 = vmatpush1.bf16.msra.mxu0 0
    %1295 = vmatprep.subr.bf16.mxu0 0
    %1296 = vmatpush1.bf16.msra.mxu0 0
    %1297 = vmatprep.subr.bf16.mxu0 0
    %1298 = vmatpush1.bf16.msra.mxu0 0
    %1299 = vmatprep.mubr.bf16.mxu0 0
    %1300 = vmatmul.mubr.bf16.gmra.mrb[0].mxu0 %v1262
    %v1301 = vpop.f32.mrb[0].mxu0
    %v1302 = vadd.f32 %v1237, %v1301
    %v1303 = vpop.f32.mrb[0].mxu0
    %v1304 = vpop.f32.mrb[0].mxu0
    %v1305 = vadd.f32 %v1240, %v1304
    %v1306 = vpop.f32.mrb[0].mxu0
    %1307 = vmatprep.mubr.bf16.mxu0 0
    %1308 = vmatmul.mubr.bf16.gmra.mrb[0].mxu0 %v1265
    %v1309 = vpop.f32.mrb[0].mxu0
    %v1310 = vadd.f32 %v1245, %v1309
    %v1311 = vpop.f32.mrb[0].mxu0
    %v1312 = vpop.f32.mrb[0].mxu0
    %v1313 = vadd.f32 %v1248, %v1312
    %v1314 = vpop.f32.mrb[0].mxu0
    %1315 = vdwg.mxu0
    %v1316 = vld [vmem:[%s17] sm:$0xff]
    %v1317 = vld [vmem:[%s17 + $0x8] sm:$0xff]
    %v1318 = vld [vmem:[%s17 + $0x10] sm:$0xff]
    %v1319 = vld [vmem:[%s17 + $0x18] sm:$0xff]
    %1321 = vset.pattern.permute.xlu0 0
    %1322 = vperm.xlu0 %1321, %v1316
    %v1323 = vpop.permute.xlu0 %1322
    %1326 = vset.pattern.permute.xlu0 0
    %1327 = vperm.xlu0 %1326, %v1317
    %v1328 = vpop.permute.xlu0 %1327
    %1331 = vset.pattern.permute.xlu0 0
    %1332 = vperm.xlu0 %1331, %v1318
    %v1333 = vpop.permute.xlu0 %1332
    %1336 = vset.pattern.permute.xlu0 0
    %1337 = vperm.xlu0 %1336, %v1319
    %v1338 = vpop.permute.xlu0 %1337
    %v1340 = vadd.f32 %v1302, %v1323
    %v1341 = vadd.f32 %v1305, %v1328
    %v1342 = vadd.f32 %v1310, %v1333
    %v1343 = vadd.f32 %v1313, %v1338
    %v1344 = vmax.f32 %v1340, 0.0
    %v1345 = vmax.f32 %v1341, 0.0
    %v1346 = vmax.f32 %v1342, 0.0
    %v1347 = vmax.f32 %v1343, 0.0
    %v1348 = vld [vmem:[%s18] sm:$0xf]
    %v1349 = vld [vmem:[%s18 + $0x4] sm:$0xf]
    %v1350 = vld [vmem:[%s18 + $0x8] sm:$0xf]
    %v1351 = vld [vmem:[%s18 + $0xc] sm:$0xf]
    %v1352 = vpack.c.bf16 %v1345, %v1344
    %v1353 = vpack.c.bf16 %v1347, %v1346
    %v1354 = vld [vmem:[%s19] sm:$0xff]
    %v1355 = vld [vmem:[%s19 + $0x8] sm:$0xff]
    %v1356 = vld [vmem:[%s19 + $0x10] sm:$0xff]
    %v1357 = vld [vmem:[%s19 + $0x18] sm:$0xff]
    %1359 = vset.pattern.permute.xlu0 0
    %1360 = vperm.xlu0 %1359, %v1354
    %v1361 = vpop.permute.xlu0 %1360
    %1364 = vset.pattern.permute.xlu0 0
    %1365 = vperm.xlu0 %1364, %v1355
    %v1366 = vpop.permute.xlu0 %1365
    %1369 = vset.pattern.permute.xlu0 0
    %1370 = vperm.xlu0 %1369, %v1356
    %v1371 = vpop.permute.xlu0 %1370
    %1374 = vset.pattern.permute.xlu0 0
    %1375 = vperm.xlu0 %1374, %v1357
    %v1376 = vpop.permute.xlu0 %1375
    %v1382 = vunpack.c.l.b16 %v1348
    %v1383 = vunpack.c.l.b16 %v1349
    %v1384 = vunpack.c.l.b16 %v1350
    %v1385 = vunpack.c.l.b16 %v1351
    %v1386 = vpack.c.b16 %v1383, %v1382
    %v1387 = vpack.c.b16 %v1385, %v1384
    %v1389 = vsel %vm806, %v1386, 0
    %v1392 = vsel %vm806, %v1387, 0
    %1394 = vmatprep.subr.bf16.mxu0 0
    %1395 = vmatpush1.bf16.msra.mxu0 %v1352
    %1396 = vmatprep.subr.bf16.mxu0 0
    %1397 = vmatpush1.bf16.msra.mxu0 %v1353
    %1398 = vmatprep.subr.bf16.mxu0 0
    %1399 = vmatpush1.bf16.msra.mxu0 0
    %1400 = vmatprep.subr.bf16.mxu0 0
    %1401 = vmatpush1.bf16.msra.mxu0 0
    %1402 = vmatprep.subr.bf16.mxu0 0
    %1403 = vmatpush1.bf16.msra.mxu0 0
    %1404 = vmatprep.subr.bf16.mxu0 0
    %1405 = vmatpush1.bf16.msra.mxu0 0
    %1406 = vmatprep.subr.bf16.mxu0 0
    %1407 = vmatpush1.bf16.msra.mxu0 0
    %1408 = vmatprep.subr.bf16.mxu0 0
    %1409 = vmatpush1.bf16.msra.mxu0 0
    %1410 = vmatprep.subr.bf16.mxu0 0
    %1411 = vmatpush1.bf16.msra.mxu0 0
    %1412 = vmatprep.subr.bf16.mxu0 0
    %1413 = vmatpush1.bf16.msra.mxu0 0
    %1414 = vmatprep.subr.bf16.mxu0 0
    %1415 = vmatpush1.bf16.msra.mxu0 0
    %1416 = vmatprep.subr.bf16.mxu0 0
    %1417 = vmatpush1.bf16.msra.mxu0 0
    %1418 = vmatprep.subr.bf16.mxu0 0
    %1419 = vmatpush1.bf16.msra.mxu0 0
    %1420 = vmatprep.subr.bf16.mxu0 0
    %1421 = vmatpush1.bf16.msra.mxu0 0
    %1422 = vmatprep.subr.bf16.mxu0 0
    %1423 = vmatpush1.bf16.msra.mxu0 0
    %1424 = vmatprep.subr.bf16.mxu0 0
    %1425 = vmatpush1.bf16.msra.mxu0 0
    %1426 = vmatprep.mubr.bf16.mxu0 0
    %1427 = vmatmul.mubr.bf16.gmra.mrb[0].mxu0 %v1389
    %v1428 = vpop.f32.mrb[0].mxu0
    %v1429 = vadd.f32 %v1361, %v1428
    %v1430 = vpop.f32.mrb[0].mxu0
    %v1431 = vpop.f32.mrb[0].mxu0
    %v1432 = vadd.f32 %v1366, %v1431
    %v1433 = vpop.f32.mrb[0].mxu0
    %1434 = vmatprep.mubr.bf16.mxu0 0
    %1435 = vmatmul.mubr.bf16.gmra.mrb[0].mxu0 %v1392
    %v1436 = vpop.f32.mrb[0].mxu0
    %v1437 = vadd.f32 %v1371, %v1436
    %v1438 = vpop.f32.mrb[0].mxu0
    %v1439 = vpop.f32.mrb[0].mxu0
    %v1440 = vadd.f32 %v1376, %v1439
    %v1441 = vpop.f32.mrb[0].mxu0
    %1442 = vdwg.mxu0
    %v1443 = vadd.f32 %v1429, %v1344
    %v1444 = vadd.f32 %v1432, %v1345
    %v1445 = vadd.f32 %v1437, %v1346
    %v1446 = vadd.f32 %v1440, %v1347
    %v1447 = vmax.f32 %v1443, 0.0
    %v1448 = vmax.f32 %v1444, 0.0
    %v1449 = vmax.f32 %v1445, 0.0
    %v1450 = vmax.f32 %v1446, 0.0
    %v1451 = vld [vmem:[%s20] sm:$0xf]
    %v1452 = vld [vmem:[%s20 + $0x4] sm:$0xf]
    %v1453 = vld [vmem:[%s20 + $0x8] sm:$0xf]
    %v1454 = vld [vmem:[%s20 + $0xc] sm:$0xf]
    %v1455 = vpack.c.bf16 %v1448, %v1447
    %v1456 = vpack.c.bf16 %v1450, %v1449
    %v1457 = vld [vmem:[%s21] sm:$0xff]
    %v1458 = vld [vmem:[%s21 + $0x8] sm:$0xff]
    %v1459 = vld [vmem:[%s21 + $0x10] sm:$0xff]
    %v1460 = vld [vmem:[%s21 + $0x18] sm:$0xff]
    %1462 = vset.pattern.permute.xlu0 0
    %1463 = vperm.xlu0 %1462, %v1457
    %v1464 = vpop.permute.xlu0 %1463
    %1467 = vset.pattern.permute.xlu0 0
    %1468 = vperm.xlu0 %1467, %v1458
    %v1469 = vpop.permute.xlu0 %1468
    %1472 = vset.pattern.permute.xlu0 0
    %1473 = vperm.xlu0 %1472, %v1459
    %v1474 = vpop.permute.xlu0 %1473
    %1477 = vset.pattern.permute.xlu0 0
    %1478 = vperm.xlu0 %1477, %v1460
    %v1479 = vpop.permute.xlu0 %1478
    %v1485 = vunpack.c.l.b16 %v1451
    %v1486 = vunpack.c.l.b16 %v1452
    %v1487 = vunpack.c.l.b16 %v1453
    %v1488 = vunpack.c.l.b16 %v1454
    %v1489 = vpack.c.b16 %v1486, %v1485
    %v1490 = vpack.c.b16 %v1488, %v1487
    %v1492 = vsel %vm806, %v1489, 0
    %v1495 = vsel %vm806, %v1490, 0
    %1497 = vmatprep.subr.bf16.mxu0 0
    %1498 = vmatpush1.bf16.msra.mxu0 %v1455
    %1499 = vmatprep.subr.bf16.mxu0 0
    %1500 = vmatpush1.bf16.msra.mxu0 %v1456
    %1501 = vmatprep.subr.bf16.mxu0 0
    %1502 = vmatpush1.bf16.msra.mxu0 0
    %1503 = vmatprep.subr.bf16.mxu0 0
    %1504 = vmatpush1.bf16.msra.mxu0 0
    %1505 = vmatprep.subr.bf16.mxu0 0
    %1506 = vmatpush1.bf16.msra.mxu0 0
    %1507 = vmatprep.subr.bf16.mxu0 0
    %1508 = vmatpush1.bf16.msra.mxu0 0
    %1509 = vmatprep.subr.bf16.mxu0 0
    %1510 = vmatpush1.bf16.msra.mxu0 0
    %1511 = vmatprep.subr.bf16.mxu0 0
    %1512 = vmatpush1.bf16.msra.mxu0 0
    %1513 = vmatprep.subr.bf16.mxu0 0
    %1514 = vmatpush1.bf16.msra.mxu0 0
    %1515 = vmatprep.subr.bf16.mxu0 0
    %1516 = vmatpush1.bf16.msra.mxu0 0
    %1517 = vmatprep.subr.bf16.mxu0 0
    %1518 = vmatpush1.bf16.msra.mxu0 0
    %1519 = vmatprep.subr.bf16.mxu0 0
    %1520 = vmatpush1.bf16.msra.mxu0 0
    %1521 = vmatprep.subr.bf16.mxu0 0
    %1522 = vmatpush1.bf16.msra.mxu0 0
    %1523 = vmatprep.subr.bf16.mxu0 0
    %1524 = vmatpush1.bf16.msra.mxu0 0
    %1525 = vmatprep.subr.bf16.mxu0 0
    %1526 = vmatpush1.bf16.msra.mxu0 0
    %1527 = vmatprep.subr.bf16.mxu0 0
    %1528 = vmatpush1.bf16.msra.mxu0 0
    %1529 = vmatprep.mubr.bf16.mxu0 0
    %1530 = vmatmul.mubr.bf16.gmra.mrb[0].mxu0 %v1492
    %v1531 = vpop.f32.mrb[0].mxu0
    %v1532 = vadd.f32 %v1464, %v1531
    %v1533 = vpop.f32.mrb[0].mxu0
    %v1534 = vpop.f32.mrb[0].mxu0
    %v1535 = vadd.f32 %v1469, %v1534
    %v1536 = vpop.f32.mrb[0].mxu0
    %1537 = vmatprep.mubr.bf16.mxu0 0
    %1538 = vmatmul.mubr.bf16.gmra.mrb[0].mxu0 %v1495
    %v1539 = vpop.f32.mrb[0].mxu0
    %v1540 = vadd.f32 %v1474, %v1539
    %v1541 = vpop.f32.mrb[0].mxu0
    %v1542 = vpop.f32.mrb[0].mxu0
    %v1543 = vadd.f32 %v1479, %v1542
    %v1544 = vpop.f32.mrb[0].mxu0
    %1545 = vdwg.mxu0
    %v1546 = vadd.f32 %v1532, %v1447
    %v1547 = vadd.f32 %v1535, %v1448
    %v1548 = vadd.f32 %v1540, %v1449
    %v1549 = vadd.f32 %v1543, %v1450
    %v1550 = vmax.f32 %v1546, 0.0
    %v1551 = vmax.f32 %v1547, 0.0
    %v1552 = vmax.f32 %v1548, 0.0
    %v1553 = vmax.f32 %v1549, 0.0
    %v1554 = vmul.f32 %v1550, %v1550
    %v1555 = vmul.f32 %v1551, %v1551
    %v1556 = vmul.f32 %v1552, %v1552
    %v1557 = vmul.f32 %v1553, %v1553
    %v1558 = vadd.f32 %v1554, %v1555
    %v1559 = vadd.f32 %v1558, %v1556
    %v1560 = vadd.f32 %v1559, %v1557
    %v1561 = vrot.slane %v1560, 4
    %v1562 = vadd.f32 %v1560, %v1561
    %v1563 = vrot.slane %v1562, 2
    %v1564 = vadd.f32 %v1562, %v1563
    %v1565 = vrot.slane %v1564, 1
    %v1566 = vadd.f32 %v1564, %v1565
    %v1567 = vrsqrt.pop %v1566
    %v1568 = vmul.f32 %v1566, %v1567
    %vm1569 = vcmp.eq.f32.partialorder %v1566, inf
    %v1570 = vsel %vm1569, %v1566, %v1568
    %vm1571 = vcmp.eq.f32.partialorder %v1566, 0.0
    %v1572 = vand.u32 %v1566, 2147483648
    %v1573 = vsel %vm1571, %v1572, %v1570
    %v1574 = vmax.f32 %v1573, 1e-12
    %v1575 = vrcp.pop %v1574
    %v1576 = vmul.f32 %v1550, %v1575
    %v1577 = vmul.f32 %v1551, %v1575
    %v1578 = vmul.f32 %v1552, %v1575
    %v1579 = vmul.f32 %v1553, %v1575
    %v1580 = vld [vmem:[%s22] sm:$0x7]
    %v1581 = vpack.c.bf16 %v1577, %v1576
    %v1582 = vpack.c.bf16 %v1579, %v1578
    %v1583 = vld [vmem:[%s23] sm:$0x1f]
    %1585 = vset.pattern.permute.xlu0 0
    %1586 = vperm.xlu0 %1585, %v1583
    %v1587 = vpop.permute.xlu0 %1586
    %v1590 = vsel %vm806, %v1580, 0
    %1592 = vmatprep.subr.bf16.mxu0 0
    %1593 = vmatpush1.bf16.msra.mxu0 %v1581
    %1594 = vmatprep.subr.bf16.mxu0 0
    %1595 = vmatpush1.bf16.msra.mxu0 %v1582
    %1596 = vmatprep.subr.bf16.mxu0 0
    %1597 = vmatpush1.bf16.msra.mxu0 0
    %1598 = vmatprep.subr.bf16.mxu0 0
    %1599 = vmatpush1.bf16.msra.mxu0 0
    %1600 = vmatprep.subr.bf16.mxu0 0
    %1601 = vmatpush1.bf16.msra.mxu0 0
    %1602 = vmatprep.subr.bf16.mxu0 0
    %1603 = vmatpush1.bf16.msra.mxu0 0
    %1604 = vmatprep.subr.bf16.mxu0 0
    %1605 = vmatpush1.bf16.msra.mxu0 0
    %1606 = vmatprep.subr.bf16.mxu0 0
    %1607 = vmatpush1.bf16.msra.mxu0 0
    %1608 = vmatprep.subr.bf16.mxu0 0
    %1609 = vmatpush1.bf16.msra.mxu0 0
    %1610 = vmatprep.subr.bf16.mxu0 0
    %1611 = vmatpush1.bf16.msra.mxu0 0
    %1612 = vmatprep.subr.bf16.mxu0 0
    %1613 = vmatpush1.bf16.msra.mxu0 0
    %1614 = vmatprep.subr.bf16.mxu0 0
    %1615 = vmatpush1.bf16.msra.mxu0 0
    %1616 = vmatprep.subr.bf16.mxu0 0
    %1617 = vmatpush1.bf16.msra.mxu0 0
    %1618 = vmatprep.subr.bf16.mxu0 0
    %1619 = vmatpush1.bf16.msra.mxu0 0
    %1620 = vmatprep.subr.bf16.mxu0 0
    %1621 = vmatpush1.bf16.msra.mxu0 0
    %1622 = vmatprep.subr.bf16.mxu0 0
    %1623 = vmatpush1.bf16.msra.mxu0 0
    %1624 = vmatprep.mubr.bf16.mxu0 0
    %1625 = vmatmul.mubr.bf16.gmra.mrb[0].mxu0 %v1590
    %v1626 = vpop.f32.mrb[0].mxu0
    %v1627 = vadd.f32 %v1587, %v1626
    %v1628 = vpop.f32.mrb[0].mxu0
    %v1629 = vpop.f32.mrb[0].mxu0
    %v1630 = vpop.f32.mrb[0].mxu0
    %1631 = vdwg.mxu0
    %1632 = vst [vmem:[#allocation2] sm:$0x1f] %v1627
    // Predicated region
    $region98: #{tpu_custom_call.1} parent=1 // pred_check
      _
    $region99: #{tpu_custom_call.1} parent=1 // pred_check_branch
      %1634 = sbr.rel (0) target = $region101
    $region100: #{tpu_custom_call.1} parent=1 // pred_region
      %s1636 = ssub.s32 128, 128
      %1637 = vsyncadd [#allocation3], %s1636
      %s1639 = sshll.u32 [#allocation2], 4
      %s1640 = int_to_ptr.vmem [resolvable:$true] %s1639
      %1642 = dma.vmem_to_hbm [thread:$0]  %s1640, 128, %s24, [#allocation3]
    $region101: #{tpu_custom_call.1} parent=1 // pred_fallthru
      _
    // Predicated region
    $region102: #{tpu_custom_call.1} parent=1 // pred_check
      _
    $region103: #{tpu_custom_call.1} parent=1 // pred_check_branch
      %1644 = sbr.rel (0) target = $region105
    $region104: #{tpu_custom_call.1} parent=1 // pred_region
      %1645 = dma.done [#allocation3], 128
    $region105: #{tpu_custom_call.1} parent=1 // pred_fallthru
      _
    %1646 = vsyncpa [#allocation3], 1

</llo_original>
